<compile_context>
chip_gen: v5e
topology: v5e:2x2
jax: 0.10.0
libtpu: 0.0.40
codegen_flags: <defaults>
</compile_context>

<pallas_src>
import jax
import jax.numpy as jnp
from jax import lax
from jax.experimental import pallas as pl
from jax.experimental.pallas import tpu as pltpu


# ----------------------------------------------------------------------------
# Pallas kernel: entire forward (input projection + recurrence + output head)
# in one invocation. x arrives time-major, flattened, bf16: (T*B, D_in).
# Gate stacking order along the 4H axis: [g, i, f, o].
# ----------------------------------------------------------------------------
def lstm_kernel(x_ref, wx_ref, wh_ref, b_ref, wp_ref, bp_ref, out_ref, zx_scr):
    B = out_ref.shape[0]
    H = wh_ref.shape[0]
    H4 = 4 * H
    TB = x_ref.shape[0]
    T = TB // B

    cd = wh_ref.dtype  # bf16 compute dtype for MXU operands

    # (1) Hoisted input projection: one (T*B, D) x (D, 4H) bf16 MXU matmul
    # (f32 accumulate) with the fused bias (bx + bh) added once. Result lives
    # in f32 VMEM scratch for the duration of the recurrence.
    zx_scr[...] = (
        jnp.dot(x_ref[...], wx_ref[...], preferred_element_type=jnp.float32)
        + b_ref[...]
    )

    # Lane mask (hoisted out of the loop): lanes [0, H) -> g gate (tanh),
    # lanes [H, 4H) -> i/f/o gates (sigmoid, via the tanh identity below).
    # With H=32, 4H=128 this is exactly one full-lane vreg.
    g_mask = lax.broadcasted_iota(jnp.int32, (B, H4), 1) < H

    wh = wh_ref[...]  # (H, 4H) bf16, loaded once and held across steps

    def step(t, carry):
        h_prev, c_prev = carry
        start = pl.multiple_of(t * B, B)
        zx_t = zx_scr[pl.ds(start, B), :]                      # (B, 4H) f32
        z = zx_t + jnp.dot(h_prev.astype(cd), wh,
                           preferred_element_type=jnp.float32)
        # Single-tanh activation for all four gates:
        #   sigmoid(x) = 0.5 * tanh(0.5 * x) + 0.5
        # g lanes get tanh(z); i/f/o lanes get sigmoid(z) from the same tanh.
        z_pre = jnp.where(g_mask, z, 0.5 * z)
        t_act = jnp.tanh(z_pre)
        act = jnp.where(g_mask, t_act, 0.5 * t_act + 0.5)
        g = act[:, 0 * H:1 * H]
        i = act[:, 1 * H:2 * H]
        f = act[:, 2 * H:3 * H]
        o = act[:, 3 * H:4 * H]
        c_new = g * i + c_prev * f
        h_new = jnp.tanh(c_new) * o
        return h_new, c_new

    h0 = jnp.zeros((B, H), jnp.float32)
    c0 = jnp.zeros((B, H), jnp.float32)
    # Full unroll only while T is small; bound it for long sequences (serial
    # recurrence => no extra overlap from more unrolling, only vreg pressure).
    unroll = True if T <= 16 else 8
    h_final, _ = lax.fori_loop(0, T, step, (h0, c0), unroll=unroll)

    # (2) Output head: lane-padded Wp/bp -> dense 128-lane (unmasked) store.
    out_ref[...] = (
        jnp.dot(h_final.astype(cd), wp_ref[...],
                preferred_element_type=jnp.float32)
        + bp_ref[...]
    ).astype(out_ref.dtype)


# ----------------------------------------------------------------------------
# Wrapper: layout plumbing (time-major flatten, bf16 casts, lane padding)
# ----------------------------------------------------------------------------
@jax.jit
def lstm_forward(x_btd, wx, wh, b, wp, bp):
    """x_btd: (batch, seq, input_dim) f32. Weights f32 (cast to bf16 here)."""
    B, T, D = x_btd.shape
    H = wh.shape[0]
    O = wp.shape[1]
    # The torch module's (H, H) h/c buffers only broadcast correctly if B == H.
    assert B == H, "batch_size must equal hidden_dim (torch module semantics)"
    assert T >= 1, "seq_length must be >= 1"
    assert B % 8 == 0, "batch/hidden must be a multiple of 8 (sublane alignment)"

    O_pad = ((O + 127) // 128) * 128

    cd = jnp.bfloat16
    # time-major, flattened, pre-cast to bf16 for the hoisted input projection
    x2d = jnp.transpose(x_btd, (1, 0, 2)).reshape(T * B, D).astype(cd)

    wx_c = wx.astype(cd)                                         # (D, 4H)
    wh_c = wh.astype(cd)                                         # (H, 4H)
    wp_c = jnp.pad(wp, ((0, 0), (0, O_pad - O))).astype(cd)      # (H, O_pad)
    bp_c = jnp.pad(bp, ((0, 0), (0, O_pad - O)))                 # (1, O_pad) f32

    vmem_spec = lambda: pl.BlockSpec(memory_space=pltpu.MemorySpace.VMEM)

    out_full = pl.pallas_call(
        lstm_kernel,
        out_shape=jax.ShapeDtypeStruct((B, O_pad), jnp.float32),
        in_specs=[vmem_spec() for _ in range(6)],
        out_specs=vmem_spec(),
        # ZX scratch kept f32: at these shapes it is ~T*B*4H*4 B (128 KiB) and
        # avoids a per-step bf16->f32 cast on the serial path. For large T
        # (>~1k) switch to a time-chunk grid and/or bf16 scratch.
        scratch_shapes=[pltpu.VMEM((T * B, 4 * H), jnp.float32)],
    )(x2d, wx_c, wh_c, b, wp_c, bp_c)

    return out_full[:, :O]


# ----------------------------------------------------------------------------
# Deterministic parameter init (mimics nn.Linear's U(-1/sqrt(fan_in), +))
# ----------------------------------------------------------------------------
def init_params(key, input_dim, hidden_dim, output_dim):
    def linear(k, fan_in, fan_out):
        kw, kb = jax.random.split(k)
        bound = 1.0 / jnp.sqrt(float(fan_in))
        w = jax.random.uniform(kw, (fan_in, fan_out), jnp.float32, -bound, bound)
        bb = jax.random.uniform(kb, (fan_out,), jnp.float32, -bound, bound)
        return w, bb

    keys = jax.random.split(key, 9)
    # gate order: g, i, f, o
    wgx, bgx = linear(keys[0], input_dim, hidden_dim)
    wix, bix = linear(keys[1], input_dim, hidden_dim)
    wfx, bfx = linear(keys[2], input_dim, hidden_dim)
    wox, box = linear(keys[3], input_dim, hidden_dim)
    wgh, bgh = linear(keys[4], hidden_dim, hidden_dim)
    wih, bih = linear(keys[5], hidden_dim, hidden_dim)
    wfh, bfh = linear(keys[6], hidden_dim, hidden_dim)
    woh, boh = linear(keys[7], hidden_dim, hidden_dim)
    wp, bp = linear(keys[8], hidden_dim, output_dim)

    wx = jnp.concatenate([wgx, wix, wfx, wox], axis=1)            # (D, 4H)
    wh = jnp.concatenate([wgh, wih, wfh, woh], axis=1)            # (H, 4H)
    bx = jnp.concatenate([bgx, bix, bfx, box])
    bh = jnp.concatenate([bgh, bih, bfh, boh])
    b = (bx + bh)[None, :]                                        # (1, 4H) fused
    bp = bp[None, :]                                              # (1, O)
    # The module's extra bg/bi/bf/bo/bp buffers are zeros -> numerically inert.
    return wx, wh, b, wp, bp


# ----------------------------------------------------------------------------
# Pure-JAX reference with the same bf16-MXU / f32-accumulate numerics
# (reference keeps the textbook sigmoid; the kernel's tanh-identity sigmoid
# matches it to ~1e-7, far inside the bf16-matmul-dominated tolerance.)
# ----------------------------------------------------------------------------
def ref_lstm(x_btd, wx, wh, b, wp, bp):
    B, T, D = x_btd.shape
    H = wh.shape[0]
    cd = jnp.bfloat16
    x_tbd = jnp.transpose(x_btd, (1, 0, 2))
    zx = (jnp.dot(x_tbd.reshape(T * B, D).astype(cd), wx.astype(cd),
                  preferred_element_type=jnp.float32) + b).reshape(T, B, 4 * H)
    h = jnp.zeros((H, H), jnp.float32)   # torch buffer shape; B == H
    c = jnp.zeros((H, H), jnp.float32)
    for t in range(T):
        z = zx[t] + jnp.dot(h.astype(cd), wh.astype(cd),
                            preferred_element_type=jnp.float32)
        g = jnp.tanh(z[:, 0 * H:1 * H])
        i = jax.nn.sigmoid(z[:, 1 * H:2 * H])
        f = jax.nn.sigmoid(z[:, 2 * H:3 * H])
        o = jax.nn.sigmoid(z[:, 3 * H:4 * H])
        c = g * i + c * f
        h = jnp.tanh(c) * o
    return jnp.dot(h.astype(cd), wp.astype(cd),
                   preferred_element_type=jnp.float32) + bp


if __name__ == "__main__":
    # batch_size must equal hidden_dim for the torch module's broadcasting
    # (h, c buffers are (hidden, hidden)).
    seq_length = 8
    input_dim = 16
    hidden_dim = 32
    output_dim = 8
    batch_size = hidden_dim  # 32

    key = jax.random.PRNGKey(0)
    k_x, k_p = jax.random.split(key)

    # torch-style input: (batch, seq, input_dim)
    x_btd = jax.random.normal(k_x, (batch_size, seq_length, input_dim),
                              jnp.float32)
    wx, wh, b, wp, bp = init_params(k_p, input_dim, hidden_dim, output_dim)

    out = lstm_forward(x_btd, wx, wh, b, wp, bp)
    out = jax.block_until_ready(out)

    ref = ref_lstm(x_btd, wx, wh, b, wp, bp)
    assert out.shape == (batch_size, output_dim)
    max_err = float(jnp.max(jnp.abs(out - ref)))
    assert max_err < 2e-3, f"max abs err vs reference: {max_err}"

    print("KERNEL_OK")
</pallas_src>

<mosaic_0001>
module attributes {stable_mosaic.version = 11 : i64} {
  func.func @lstm_kernel(%arg0: memref<256x16xbf16, #tpu.memory_space<vmem>>, %arg1: memref<16x128xbf16, #tpu.memory_space<vmem>>, %arg2: memref<32x128xbf16, #tpu.memory_space<vmem>>, %arg3: memref<1x128xf32, #tpu.memory_space<vmem>>, %arg4: memref<32x128xbf16, #tpu.memory_space<vmem>>, %arg5: memref<1x128xf32, #tpu.memory_space<vmem>>, %arg6: memref<32x128xf32, #tpu.memory_space<vmem>>, %arg7: memref<256x128xf32, #tpu.memory_space<vmem>>) attributes {dimension_semantics = [], scalar_prefetch = 0 : i64, scratch_operands = 1 : i64, tpu.core_type = #tpu.core_type<tc>} {
    %c0 = arith.constant 0 : index
    %c0_0 = arith.constant 0 : index
    %0 = vector.load %arg0[%c0, %c0_0] : memref<256x16xbf16, #tpu.memory_space<vmem>>, vector<256x16xbf16>
    %c0_1 = arith.constant 0 : index
    %c0_2 = arith.constant 0 : index
    %1 = vector.load %arg1[%c0_1, %c0_2] : memref<16x128xbf16, #tpu.memory_space<vmem>>, vector<16x128xbf16>
    %cst = arith.constant dense<0.000000e+00> : vector<256x128xf32>
    %2 = tpu.matmul %0, %1, %cst {dimension_numbers = #tpu.dot_dimension_numbers<[1], [0], [0], [1], [0, 0, 1, 1], [], []>} : vector<256x16xbf16>, vector<16x128xbf16>, vector<256x128xf32> -> vector<256x128xf32>
    %c0_3 = arith.constant 0 : index
    %c0_4 = arith.constant 0 : index
    %3 = vector.load %arg3[%c0_3, %c0_4] : memref<1x128xf32, #tpu.memory_space<vmem>>, vector<1x128xf32>
    %4 = vector.broadcast %3 : vector<1x128xf32> to vector<256x128xf32>
    %5 = arith.addf %2, %4 : vector<256x128xf32>
    %c0_5 = arith.constant 0 : index
    %c0_6 = arith.constant 0 : index
    %6 = vector.load %arg7[%c0_5, %c0_6] : memref<256x128xf32, #tpu.memory_space<vmem>>, vector<256x128xf32>
    tpu.vector_store %arg7[%c0_5, %c0_6], %5 {strides = array<i32>} : memref<256x128xf32, #tpu.memory_space<vmem>>, vector<256x128xf32>,
    %7 = tpu.iota {dimensions = array<i32: 1>} : vector<32x128xi32>
    %c32_i32 = arith.constant 32 : i32
    %8 = vector.broadcast %c32_i32 : i32 to vector<32x128xi32>
    %9 = arith.cmpi slt, %7, %8 : vector<32x128xi32>
    %c0_7 = arith.constant 0 : index
    %c0_8 = arith.constant 0 : index
    %10 = vector.load %arg2[%c0_7, %c0_8] : memref<32x128xbf16, #tpu.memory_space<vmem>>, vector<32x128xbf16>
    %cst_9 = arith.constant 0.000000e+00 : f32
    %11 = vector.broadcast %cst_9 : f32 to vector<32x32xf32>
    %cst_10 = arith.constant 0.000000e+00 : f32
    %12 = vector.broadcast %cst_10 : f32 to vector<32x32xf32>
    %c0_i32 = arith.constant 0 : i32
    %c32_i32_11 = arith.constant 32 : i32
    %13 = arith.muli %c0_i32, %c32_i32_11 : i32
    %14 = tpu.assume_multiple %13, 32 : i32
    %15 = arith.index_cast %14 : i32 to index
    %c0_12 = arith.constant 0 : index
    %16 = vector.load %arg7[%15, %c0_12] : memref<256x128xf32, #tpu.memory_space<vmem>>, vector<32x128xf32>
    %17 = arith.truncf %11 : vector<32x32xf32> to vector<32x32xbf16>
    %cst_13 = arith.constant dense<0.000000e+00> : vector<32x128xf32>
    %18 = tpu.matmul %17, %10, %cst_13 {dimension_numbers = #tpu.dot_dimension_numbers<[1], [0], [0], [1], [0, 0, 1, 1], [], []>} : vector<32x32xbf16>, vector<32x128xbf16>, vector<32x128xf32> -> vector<32x128xf32>
    %19 = arith.addf %16, %18 : vector<32x128xf32>
    %cst_14 = arith.constant 5.000000e-01 : f32
    %20 = vector.broadcast %cst_14 : f32 to vector<32x128xf32>
    %21 = arith.mulf %20, %19 : vector<32x128xf32>
    %22 = arith.select %9, %19, %21 : vector<32x128xi1>, vector<32x128xf32>
    %23 = math.tanh %22 : vector<32x128xf32>
    %cst_15 = arith.constant 5.000000e-01 : f32
    %24 = vector.broadcast %cst_15 : f32 to vector<32x128xf32>
    %25 = arith.mulf %24, %23 : vector<32x128xf32>
    %cst_16 = arith.constant 5.000000e-01 : f32
    %26 = vector.broadcast %cst_16 : f32 to vector<32x128xf32>
    %27 = arith.addf %25, %26 : vector<32x128xf32>
    %28 = arith.select %9, %23, %27 : vector<32x128xi1>, vector<32x128xf32>
    %29 = vector.extract_strided_slice %28 {offsets = [0, 0], sizes = [32, 32], strides = [1, 1]} : vector<32x128xf32> to vector<32x32xf32>
    %30 = vector.extract_strided_slice %28 {offsets = [0, 32], sizes = [32, 32], strides = [1, 1]} : vector<32x128xf32> to vector<32x32xf32>
    %31 = vector.extract_strided_slice %28 {offsets = [0, 64], sizes = [32, 32], strides = [1, 1]} : vector<32x128xf32> to vector<32x32xf32>
    %32 = vector.extract_strided_slice %28 {offsets = [0, 96], sizes = [32, 32], strides = [1, 1]} : vector<32x128xf32> to vector<32x32xf32>
    %33 = arith.mulf %29, %30 : vector<32x32xf32>
    %34 = arith.mulf %12, %31 : vector<32x32xf32>
    %35 = arith.addf %33, %34 : vector<32x32xf32>
    %36 = math.tanh %35 : vector<32x32xf32>
    %37 = arith.mulf %36, %32 : vector<32x32xf32>
    %c1_i32 = arith.constant 1 : i32
    %c32_i32_17 = arith.constant 32 : i32
    %38 = arith.muli %c1_i32, %c32_i32_17 : i32
    %39 = tpu.assume_multiple %38, 32 : i32
    %40 = arith.index_cast %39 : i32 to index
    %c0_18 = arith.constant 0 : index
    %41 = vector.load %arg7[%40, %c0_18] : memref<256x128xf32, #tpu.memory_space<vmem>>, vector<32x128xf32>
    %42 = arith.truncf %37 : vector<32x32xf32> to vector<32x32xbf16>
    %cst_19 = arith.constant dense<0.000000e+00> : vector<32x128xf32>
    %43 = tpu.matmul %42, %10, %cst_19 {dimension_numbers = #tpu.dot_dimension_numbers<[1], [0], [0], [1], [0, 0, 1, 1], [], []>} : vector<32x32xbf16>, vector<32x128xbf16>, vector<32x128xf32> -> vector<32x128xf32>
    %44 = arith.addf %41, %43 : vector<32x128xf32>
    %cst_20 = arith.constant 5.000000e-01 : f32
    %45 = vector.broadcast %cst_20 : f32 to vector<32x128xf32>
    %46 = arith.mulf %45, %44 : vector<32x128xf32>
    %47 = arith.select %9, %44, %46 : vector<32x128xi1>, vector<32x128xf32>
    %48 = math.tanh %47 : vector<32x128xf32>
    %cst_21 = arith.constant 5.000000e-01 : f32
    %49 = vector.broadcast %cst_21 : f32 to vector<32x128xf32>
    %50 = arith.mulf %49, %48 : vector<32x128xf32>
    %cst_22 = arith.constant 5.000000e-01 : f32
    %51 = vector.broadcast %cst_22 : f32 to vector<32x128xf32>
    %52 = arith.addf %50, %51 : vector<32x128xf32>
    %53 = arith.select %9, %48, %52 : vector<32x128xi1>, vector<32x128xf32>
    %54 = vector.extract_strided_slice %53 {offsets = [0, 0], sizes = [32, 32], strides = [1, 1]} : vector<32x128xf32> to vector<32x32xf32>
    %55 = vector.extract_strided_slice %53 {offsets = [0, 32], sizes = [32, 32], strides = [1, 1]} : vector<32x128xf32> to vector<32x32xf32>
    %56 = vector.extract_strided_slice %53 {offsets = [0, 64], sizes = [32, 32], strides = [1, 1]} : vector<32x128xf32> to vector<32x32xf32>
    %57 = vector.extract_strided_slice %53 {offsets = [0, 96], sizes = [32, 32], strides = [1, 1]} : vector<32x128xf32> to vector<32x32xf32>
    %58 = arith.mulf %54, %55 : vector<32x32xf32>
    %59 = arith.mulf %35, %56 : vector<32x32xf32>
    %60 = arith.addf %58, %59 : vector<32x32xf32>
    %61 = math.tanh %60 : vector<32x32xf32>
    %62 = arith.mulf %61, %57 : vector<32x32xf32>
    %c2_i32 = arith.constant 2 : i32
    %c32_i32_23 = arith.constant 32 : i32
    %63 = arith.muli %c2_i32, %c32_i32_23 : i32
    %64 = tpu.assume_multiple %63, 32 : i32
    %65 = arith.index_cast %64 : i32 to index
    %c0_24 = arith.constant 0 : index
    %66 = vector.load %arg7[%65, %c0_24] : memref<256x128xf32, #tpu.memory_space<vmem>>, vector<32x128xf32>
    %67 = arith.truncf %62 : vector<32x32xf32> to vector<32x32xbf16>
    %cst_25 = arith.constant dense<0.000000e+00> : vector<32x128xf32>
    %68 = tpu.matmul %67, %10, %cst_25 {dimension_numbers = #tpu.dot_dimension_numbers<[1], [0], [0], [1], [0, 0, 1, 1], [], []>} : vector<32x32xbf16>, vector<32x128xbf16>, vector<32x128xf32> -> vector<32x128xf32>
    %69 = arith.addf %66, %68 : vector<32x128xf32>
    %cst_26 = arith.constant 5.000000e-01 : f32
    %70 = vector.broadcast %cst_26 : f32 to vector<32x128xf32>
    %71 = arith.mulf %70, %69 : vector<32x128xf32>
    %72 = arith.select %9, %69, %71 : vector<32x128xi1>, vector<32x128xf32>
    %73 = math.tanh %72 : vector<32x128xf32>
    %cst_27 = arith.constant 5.000000e-01 : f32
    %74 = vector.broadcast %cst_27 : f32 to vector<32x128xf32>
    %75 = arith.mulf %74, %73 : vector<32x128xf32>
    %cst_28 = arith.constant 5.000000e-01 : f32
    %76 = vector.broadcast %cst_28 : f32 to vector<32x128xf32>
    %77 = arith.addf %75, %76 : vector<32x128xf32>
    %78 = arith.select %9, %73, %77 : vector<32x128xi1>, vector<32x128xf32>
    %79 = vector.extract_strided_slice %78 {offsets = [0, 0], sizes = [32, 32], strides = [1, 1]} : vector<32x128xf32> to vector<32x32xf32>
    %80 = vector.extract_strided_slice %78 {offsets = [0, 32], sizes = [32, 32], strides = [1, 1]} : vector<32x128xf32> to vector<32x32xf32>
    %81 = vector.extract_strided_slice %78 {offsets = [0, 64], sizes = [32, 32], strides = [1, 1]} : vector<32x128xf32> to vector<32x32xf32>
    %82 = vector.extract_strided_slice %78 {offsets = [0, 96], sizes = [32, 32], strides = [1, 1]} : vector<32x128xf32> to vector<32x32xf32>
    %83 = arith.mulf %79, %80 : vector<32x32xf32>
    %84 = arith.mulf %60, %81 : vector<32x32xf32>
    %85 = arith.addf %83, %84 : vector<32x32xf32>
    %86 = math.tanh %85 : vector<32x32xf32>
    %87 = arith.mulf %86, %82 : vector<32x32xf32>
    %c3_i32 = arith.constant 3 : i32
    %c32_i32_29 = arith.constant 32 : i32
    %88 = arith.muli %c3_i32, %c32_i32_29 : i32
    %89 = tpu.assume_multiple %88, 32 : i32
    %90 = arith.index_cast %89 : i32 to index
    %c0_30 = arith.constant 0 : index
    %91 = vector.load %arg7[%90, %c0_30] : memref<256x128xf32, #tpu.memory_space<vmem>>, vector<32x128xf32>
    %92 = arith.truncf %87 : vector<32x32xf32> to vector<32x32xbf16>
    %cst_31 = arith.constant dense<0.000000e+00> : vector<32x128xf32>
    %93 = tpu.matmul %92, %10, %cst_31 {dimension_numbers = #tpu.dot_dimension_numbers<[1], [0], [0], [1], [0, 0, 1, 1], [], []>} : vector<32x32xbf16>, vector<32x128xbf16>, vector<32x128xf32> -> vector<32x128xf32>
    %94 = arith.addf %91, %93 : vector<32x128xf32>
    %cst_32 = arith.constant 5.000000e-01 : f32
    %95 = vector.broadcast %cst_32 : f32 to vector<32x128xf32>
    %96 = arith.mulf %95, %94 : vector<32x128xf32>
    %97 = arith.select %9, %94, %96 : vector<32x128xi1>, vector<32x128xf32>
    %98 = math.tanh %97 : vector<32x128xf32>
    %cst_33 = arith.constant 5.000000e-01 : f32
    %99 = vector.broadcast %cst_33 : f32 to vector<32x128xf32>
    %100 = arith.mulf %99, %98 : vector<32x128xf32>
    %cst_34 = arith.constant 5.000000e-01 : f32
    %101 = vector.broadcast %cst_34 : f32 to vector<32x128xf32>
    %102 = arith.addf %100, %101 : vector<32x128xf32>
    %103 = arith.select %9, %98, %102 : vector<32x128xi1>, vector<32x128xf32>
    %104 = vector.extract_strided_slice %103 {offsets = [0, 0], sizes = [32, 32], strides = [1, 1]} : vector<32x128xf32> to vector<32x32xf32>
    %105 = vector.extract_strided_slice %103 {offsets = [0, 32], sizes = [32, 32], strides = [1, 1]} : vector<32x128xf32> to vector<32x32xf32>
    %106 = vector.extract_strided_slice %103 {offsets = [0, 64], sizes = [32, 32], strides = [1, 1]} : vector<32x128xf32> to vector<32x32xf32>
    %107 = vector.extract_strided_slice %103 {offsets = [0, 96], sizes = [32, 32], strides = [1, 1]} : vector<32x128xf32> to vector<32x32xf32>
    %108 = arith.mulf %104, %105 : vector<32x32xf32>
    %109 = arith.mulf %85, %106 : vector<32x32xf32>
    %110 = arith.addf %108, %109 : vector<32x32xf32>
    %111 = math.tanh %110 : vector<32x32xf32>
    %112 = arith.mulf %111, %107 : vector<32x32xf32>
    %c4_i32 = arith.constant 4 : i32
    %c32_i32_35 = arith.constant 32 : i32
    %113 = arith.muli %c4_i32, %c32_i32_35 : i32
    %114 = tpu.assume_multiple %113, 32 : i32
    %115 = arith.index_cast %114 : i32 to index
    %c0_36 = arith.constant 0 : index
    %116 = vector.load %arg7[%115, %c0_36] : memref<256x128xf32, #tpu.memory_space<vmem>>, vector<32x128xf32>
    %117 = arith.truncf %112 : vector<32x32xf32> to vector<32x32xbf16>
    %cst_37 = arith.constant dense<0.000000e+00> : vector<32x128xf32>
    %118 = tpu.matmul %117, %10, %cst_37 {dimension_numbers = #tpu.dot_dimension_numbers<[1], [0], [0], [1], [0, 0, 1, 1], [], []>} : vector<32x32xbf16>, vector<32x128xbf16>, vector<32x128xf32> -> vector<32x128xf32>
    %119 = arith.addf %116, %118 : vector<32x128xf32>
    %cst_38 = arith.constant 5.000000e-01 : f32
    %120 = vector.broadcast %cst_38 : f32 to vector<32x128xf32>
    %121 = arith.mulf %120, %119 : vector<32x128xf32>
    %122 = arith.select %9, %119, %121 : vector<32x128xi1>, vector<32x128xf32>
    %123 = math.tanh %122 : vector<32x128xf32>
    %cst_39 = arith.constant 5.000000e-01 : f32
    %124 = vector.broadcast %cst_39 : f32 to vector<32x128xf32>
    %125 = arith.mulf %124, %123 : vector<32x128xf32>
    %cst_40 = arith.constant 5.000000e-01 : f32
    %126 = vector.broadcast %cst_40 : f32 to vector<32x128xf32>
    %127 = arith.addf %125, %126 : vector<32x128xf32>
    %128 = arith.select %9, %123, %127 : vector<32x128xi1>, vector<32x128xf32>
    %129 = vector.extract_strided_slice %128 {offsets = [0, 0], sizes = [32, 32], strides = [1, 1]} : vector<32x128xf32> to vector<32x32xf32>
    %130 = vector.extract_strided_slice %128 {offsets = [0, 32], sizes = [32, 32], strides = [1, 1]} : vector<32x128xf32> to vector<32x32xf32>
    %131 = vector.extract_strided_slice %128 {offsets = [0, 64], sizes = [32, 32], strides = [1, 1]} : vector<32x128xf32> to vector<32x32xf32>
    %132 = vector.extract_strided_slice %128 {offsets = [0, 96], sizes = [32, 32], strides = [1, 1]} : vector<32x128xf32> to vector<32x32xf32>
    %133 = arith.mulf %129, %130 : vector<32x32xf32>
    %134 = arith.mulf %110, %131 : vector<32x32xf32>
    %135 = arith.addf %133, %134 : vector<32x32xf32>
    %136 = math.tanh %135 : vector<32x32xf32>
    %137 = arith.mulf %136, %132 : vector<32x32xf32>
    %c5_i32 = arith.constant 5 : i32
    %c32_i32_41 = arith.constant 32 : i32
    %138 = arith.muli %c5_i32, %c32_i32_41 : i32
    %139 = tpu.assume_multiple %138, 32 : i32
    %140 = arith.index_cast %139 : i32 to index
    %c0_42 = arith.constant 0 : index
    %141 = vector.load %arg7[%140, %c0_42] : memref<256x128xf32, #tpu.memory_space<vmem>>, vector<32x128xf32>
    %142 = arith.truncf %137 : vector<32x32xf32> to vector<32x32xbf16>
    %cst_43 = arith.constant dense<0.000000e+00> : vector<32x128xf32>
    %143 = tpu.matmul %142, %10, %cst_43 {dimension_numbers = #tpu.dot_dimension_numbers<[1], [0], [0], [1], [0, 0, 1, 1], [], []>} : vector<32x32xbf16>, vector<32x128xbf16>, vector<32x128xf32> -> vector<32x128xf32>
    %144 = arith.addf %141, %143 : vector<32x128xf32>
    %cst_44 = arith.constant 5.000000e-01 : f32
    %145 = vector.broadcast %cst_44 : f32 to vector<32x128xf32>
    %146 = arith.mulf %145, %144 : vector<32x128xf32>
    %147 = arith.select %9, %144, %146 : vector<32x128xi1>, vector<32x128xf32>
    %148 = math.tanh %147 : vector<32x128xf32>
    %cst_45 = arith.constant 5.000000e-01 : f32
    %149 = vector.broadcast %cst_45 : f32 to vector<32x128xf32>
    %150 = arith.mulf %149, %148 : vector<32x128xf32>
    %cst_46 = arith.constant 5.000000e-01 : f32
    %151 = vector.broadcast %cst_46 : f32 to vector<32x128xf32>
    %152 = arith.addf %150, %151 : vector<32x128xf32>
    %153 = arith.select %9, %148, %152 : vector<32x128xi1>, vector<32x128xf32>
    %154 = vector.extract_strided_slice %153 {offsets = [0, 0], sizes = [32, 32], strides = [1, 1]} : vector<32x128xf32> to vector<32x32xf32>
    %155 = vector.extract_strided_slice %153 {offsets = [0, 32], sizes = [32, 32], strides = [1, 1]} : vector<32x128xf32> to vector<32x32xf32>
    %156 = vector.extract_strided_slice %153 {offsets = [0, 64], sizes = [32, 32], strides = [1, 1]} : vector<32x128xf32> to vector<32x32xf32>
    %157 = vector.extract_strided_slice %153 {offsets = [0, 96], sizes = [32, 32], strides = [1, 1]} : vector<32x128xf32> to vector<32x32xf32>
    %158 = arith.mulf %154, %155 : vector<32x32xf32>
    %159 = arith.mulf %135, %156 : vector<32x32xf32>
    %160 = arith.addf %158, %159 : vector<32x32xf32>
    %161 = math.tanh %160 : vector<32x32xf32>
    %162 = arith.mulf %161, %157 : vector<32x32xf32>
    %c6_i32 = arith.constant 6 : i32
    %c32_i32_47 = arith.constant 32 : i32
    %163 = arith.muli %c6_i32, %c32_i32_47 : i32
    %164 = tpu.assume_multiple %163, 32 : i32
    %165 = arith.index_cast %164 : i32 to index
    %c0_48 = arith.constant 0 : index
    %166 = vector.load %arg7[%165, %c0_48] : memref<256x128xf32, #tpu.memory_space<vmem>>, vector<32x128xf32>
    %167 = arith.truncf %162 : vector<32x32xf32> to vector<32x32xbf16>
    %cst_49 = arith.constant dense<0.000000e+00> : vector<32x128xf32>
    %168 = tpu.matmul %167, %10, %cst_49 {dimension_numbers = #tpu.dot_dimension_numbers<[1], [0], [0], [1], [0, 0, 1, 1], [], []>} : vector<32x32xbf16>, vector<32x128xbf16>, vector<32x128xf32> -> vector<32x128xf32>
    %169 = arith.addf %166, %168 : vector<32x128xf32>
    %cst_50 = arith.constant 5.000000e-01 : f32
    %170 = vector.broadcast %cst_50 : f32 to vector<32x128xf32>
    %171 = arith.mulf %170, %169 : vector<32x128xf32>
    %172 = arith.select %9, %169, %171 : vector<32x128xi1>, vector<32x128xf32>
    %173 = math.tanh %172 : vector<32x128xf32>
    %cst_51 = arith.constant 5.000000e-01 : f32
    %174 = vector.broadcast %cst_51 : f32 to vector<32x128xf32>
    %175 = arith.mulf %174, %173 : vector<32x128xf32>
    %cst_52 = arith.constant 5.000000e-01 : f32
    %176 = vector.broadcast %cst_52 : f32 to vector<32x128xf32>
    %177 = arith.addf %175, %176 : vector<32x128xf32>
    %178 = arith.select %9, %173, %177 : vector<32x128xi1>, vector<32x128xf32>
    %179 = vector.extract_strided_slice %178 {offsets = [0, 0], sizes = [32, 32], strides = [1, 1]} : vector<32x128xf32> to vector<32x32xf32>
    %180 = vector.extract_strided_slice %178 {offsets = [0, 32], sizes = [32, 32], strides = [1, 1]} : vector<32x128xf32> to vector<32x32xf32>
    %181 = vector.extract_strided_slice %178 {offsets = [0, 64], sizes = [32, 32], strides = [1, 1]} : vector<32x128xf32> to vector<32x32xf32>
    %182 = vector.extract_strided_slice %178 {offsets = [0, 96], sizes = [32, 32], strides = [1, 1]} : vector<32x128xf32> to vector<32x32xf32>
    %183 = arith.mulf %179, %180 : vector<32x32xf32>
    %184 = arith.mulf %160, %181 : vector<32x32xf32>
    %185 = arith.addf %183, %184 : vector<32x32xf32>
    %186 = math.tanh %185 : vector<32x32xf32>
    %187 = arith.mulf %186, %182 : vector<32x32xf32>
    %c7_i32 = arith.constant 7 : i32
    %c32_i32_53 = arith.constant 32 : i32
    %188 = arith.muli %c7_i32, %c32_i32_53 : i32
    %189 = tpu.assume_multiple %188, 32 : i32
    %190 = arith.index_cast %189 : i32 to index
    %c0_54 = arith.constant 0 : index
    %191 = vector.load %arg7[%190, %c0_54] : memref<256x128xf32, #tpu.memory_space<vmem>>, vector<32x128xf32>
    %192 = arith.truncf %187 : vector<32x32xf32> to vector<32x32xbf16>
    %cst_55 = arith.constant dense<0.000000e+00> : vector<32x128xf32>
    %193 = tpu.matmul %192, %10, %cst_55 {dimension_numbers = #tpu.dot_dimension_numbers<[1], [0], [0], [1], [0, 0, 1, 1], [], []>} : vector<32x32xbf16>, vector<32x128xbf16>, vector<32x128xf32> -> vector<32x128xf32>
    %194 = arith.addf %191, %193 : vector<32x128xf32>
    %cst_56 = arith.constant 5.000000e-01 : f32
    %195 = vector.broadcast %cst_56 : f32 to vector<32x128xf32>
    %196 = arith.mulf %195, %194 : vector<32x128xf32>
    %197 = arith.select %9, %194, %196 : vector<32x128xi1>, vector<32x128xf32>
    %198 = math.tanh %197 : vector<32x128xf32>
    %cst_57 = arith.constant 5.000000e-01 : f32
    %199 = vector.broadcast %cst_57 : f32 to vector<32x128xf32>
    %200 = arith.mulf %199, %198 : vector<32x128xf32>
    %cst_58 = arith.constant 5.000000e-01 : f32
    %201 = vector.broadcast %cst_58 : f32 to vector<32x128xf32>
    %202 = arith.addf %200, %201 : vector<32x128xf32>
    %203 = arith.select %9, %198, %202 : vector<32x128xi1>, vector<32x128xf32>
    %204 = vector.extract_strided_slice %203 {offsets = [0, 0], sizes = [32, 32], strides = [1, 1]} : vector<32x128xf32> to vector<32x32xf32>
    %205 = vector.extract_strided_slice %203 {offsets = [0, 32], sizes = [32, 32], strides = [1, 1]} : vector<32x128xf32> to vector<32x32xf32>
    %206 = vector.extract_strided_slice %203 {offsets = [0, 64], sizes = [32, 32], strides = [1, 1]} : vector<32x128xf32> to vector<32x32xf32>
    %207 = vector.extract_strided_slice %203 {offsets = [0, 96], sizes = [32, 32], strides = [1, 1]} : vector<32x128xf32> to vector<32x32xf32>
    %208 = arith.mulf %204, %205 : vector<32x32xf32>
    %209 = arith.mulf %185, %206 : vector<32x32xf32>
    %210 = arith.addf %208, %209 : vector<32x32xf32>
    %211 = math.tanh %210 : vector<32x32xf32>
    %212 = arith.mulf %211, %207 : vector<32x32xf32>
    %c8_i32 = arith.constant 8 : i32
    %213 = arith.truncf %212 : vector<32x32xf32> to vector<32x32xbf16>
    %c0_59 = arith.constant 0 : index
    %c0_60 = arith.constant 0 : index
    %214 = vector.load %arg4[%c0_59, %c0_60] : memref<32x128xbf16, #tpu.memory_space<vmem>>, vector<32x128xbf16>
    %cst_61 = arith.constant dense<0.000000e+00> : vector<32x128xf32>
    %215 = tpu.matmul %213, %214, %cst_61 {dimension_numbers = #tpu.dot_dimension_numbers<[1], [0], [0], [1], [0, 0, 1, 1], [], []>} : vector<32x32xbf16>, vector<32x128xbf16>, vector<32x128xf32> -> vector<32x128xf32>
    %c0_62 = arith.constant 0 : index
    %c0_63 = arith.constant 0 : index
    %216 = vector.load %arg5[%c0_62, %c0_63] : memref<1x128xf32, #tpu.memory_space<vmem>>, vector<1x128xf32>
    %217 = vector.broadcast %216 : vector<1x128xf32> to vector<32x128xf32>
    %218 = arith.addf %215, %217 : vector<32x128xf32>
    %c0_64 = arith.constant 0 : index
    %c0_65 = arith.constant 0 : index
    %219 = vector.load %arg6[%c0_64, %c0_65] : memref<32x128xf32, #tpu.memory_space<vmem>>, vector<32x128xf32>
    tpu.vector_store %arg6[%c0_64, %c0_65], %218 {strides = array<i32>} : memref<32x128xf32, #tpu.memory_space<vmem>>, vector<32x128xf32>,
    return
  }
}

</mosaic_0001>

<llo_original>
// kernel: lstm_forward.1
$region0: #{lstm_forward.1}
  #allocation0 [shape = 'u32[]', space=smem, size = 0x4, offset = 0x4, fixed_abs, tag = 'smem constant byte address 0x4 - core index']
  #allocation1 [shape = 'u32[72,128]{1,0:T(1,128)}', space=vmem, size = 0x9000, scoped, tag = 'internal scratch']
  #allocation2 [shape = 'f32[256,128]{1,0:T(8,128)}', space=vmem, size = 0x20000, scoped, tag = 'scratch operand']
  %s0 = inlined_call_operand.vmem [shape: bf16[256,16], index: 0, kind: input, shape index: {}]
  %s1 = inlined_call_operand.vmem [shape: bf16[16,128], index: 1, kind: input, shape index: {}]
  %s2 = inlined_call_operand.vmem [shape: bf16[32,128], index: 2, kind: input, shape index: {}]
  %s3 = inlined_call_operand.vmem [shape: f32[1,128], index: 3, kind: input, shape index: {}]
  %s4 = inlined_call_operand.vmem [shape: bf16[32,128], index: 4, kind: input, shape index: {}]
  %s5 = inlined_call_operand.vmem [shape: f32[1,128], index: 5, kind: input, shape index: {}]
  %s6 = inlined_call_operand.vmem [shape: f32[32,128], index: 6, kind: output, shape index: {}]
  %s7 = sld [smem:[#allocation0]]
  $region34: #{lstm_forward.1} parent=0
    _
  %s9 = ssub.s32 1, %s7
  %s10 = scalar_select 0, %s9, %s7
  // Predicated region
  $region2: #{lstm_forward.1} parent=0 // pred_check
    _
  $region3: #{lstm_forward.1} parent=0 // pred_check_branch
    %12 = sbr.rel (0) target = $region5
  $region4: #{lstm_forward.1} parent=0 // pred_region
    _
  $region5: #{lstm_forward.1} parent=0 // pred_fallthru
    _
  // Predicated region
  $region6: #{lstm_forward.1} parent=0 // pred_check
    _
  $region7: #{lstm_forward.1} parent=0 // pred_check_branch
    %14 = sbr.rel (0) target = $region9
  $region8: #{lstm_forward.1} parent=0 // pred_region
    _
  $region9: #{lstm_forward.1} parent=0 // pred_fallthru
    _
  // Predicated region
  $region10: #{lstm_forward.1} parent=0 // pred_check
    _
  $region11: #{lstm_forward.1} parent=0 // pred_check_branch
    %16 = sbr.rel (0) target = $region13
  $region12: #{lstm_forward.1} parent=0 // pred_region
    _
  $region13: #{lstm_forward.1} parent=0 // pred_fallthru
    _
  // Predicated region
  $region14: #{lstm_forward.1} parent=0 // pred_check
    _
  $region15: #{lstm_forward.1} parent=0 // pred_check_branch
    %18 = sbr.rel (0) target = $region17
  $region16: #{lstm_forward.1} parent=0 // pred_region
    _
  $region17: #{lstm_forward.1} parent=0 // pred_fallthru
    _
  // Predicated region
  $region18: #{lstm_forward.1} parent=0 // pred_check
    _
  $region19: #{lstm_forward.1} parent=0 // pred_check_branch
    %20 = sbr.rel (0) target = $region21
  $region20: #{lstm_forward.1} parent=0 // pred_region
    _
  $region21: #{lstm_forward.1} parent=0 // pred_fallthru
    _
  // Predicated region
  $region22: #{lstm_forward.1} parent=0 // pred_check
    _
  $region23: #{lstm_forward.1} parent=0 // pred_check_branch
    %22 = sbr.rel (0) target = $region25
  $region24: #{lstm_forward.1} parent=0 // pred_region
    _
  $region25: #{lstm_forward.1} parent=0 // pred_fallthru
    _
  %v24 = vld [vmem:[%s0] sm:$0xf]
  %v25 = vld [vmem:[%s0 + $0x4] sm:$0xf]
  %v26 = vld [vmem:[%s0 + $0x8] sm:$0xf]
  %v27 = vld [vmem:[%s0 + $0xc] sm:$0xf]
  %v28 = vld [vmem:[%s0 + $0x10] sm:$0xf]
  %v29 = vld [vmem:[%s0 + $0x14] sm:$0xf]
  %v30 = vld [vmem:[%s0 + $0x18] sm:$0xf]
  %v31 = vld [vmem:[%s0 + $0x1c] sm:$0xf]
  %v32 = vld [vmem:[%s0 + $0x20] sm:$0xf]
  %v33 = vld [vmem:[%s0 + $0x24] sm:$0xf]
  %v34 = vld [vmem:[%s0 + $0x28] sm:$0xf]
  %v35 = vld [vmem:[%s0 + $0x2c] sm:$0xf]
  %v36 = vld [vmem:[%s0 + $0x30] sm:$0xf]
  %v37 = vld [vmem:[%s0 + $0x34] sm:$0xf]
  %v38 = vld [vmem:[%s0 + $0x38] sm:$0xf]
  %v39 = vld [vmem:[%s0 + $0x3c] sm:$0xf]
  %v40 = vld [vmem:[%s0 + $0x40] sm:$0xf]
  %v41 = vld [vmem:[%s0 + $0x44] sm:$0xf]
  %v42 = vld [vmem:[%s0 + $0x48] sm:$0xf]
  %v43 = vld [vmem:[%s0 + $0x4c] sm:$0xf]
  %v44 = vld [vmem:[%s0 + $0x50] sm:$0xf]
  %v45 = vld [vmem:[%s0 + $0x54] sm:$0xf]
  %v46 = vld [vmem:[%s0 + $0x58] sm:$0xf]
  %v47 = vld [vmem:[%s0 + $0x5c] sm:$0xf]
  %v48 = vld [vmem:[%s0 + $0x60] sm:$0xf]
  %v49 = vld [vmem:[%s0 + $0x64] sm:$0xf]
  %v50 = vld [vmem:[%s0 + $0x68] sm:$0xf]
  %v51 = vld [vmem:[%s0 + $0x6c] sm:$0xf]
  %v52 = vld [vmem:[%s0 + $0x70] sm:$0xf]
  %v53 = vld [vmem:[%s0 + $0x74] sm:$0xf]
  %v54 = vld [vmem:[%s0 + $0x78] sm:$0xf]
  %v55 = vld [vmem:[%s0 + $0x7c] sm:$0xf]
  %v56 = vld [vmem:[%s1] sm:$0xf]
  %v57 = vld [vmem:[%s1 + $0x4] sm:$0xf]
  %v58 = vld [vmem:[%s3] sm:$0x1]
  %v60 = vperm.slane %v58, 0
  %v94 = vunpack.c.l.b16 %v24
  %v95 = vunpack.c.l.b16 %v25
  %v96 = vunpack.c.l.b16 %v26
  %v97 = vunpack.c.l.b16 %v27
  %v98 = vunpack.c.l.b16 %v28
  %v99 = vunpack.c.l.b16 %v29
  %v100 = vunpack.c.l.b16 %v30
  %v101 = vunpack.c.l.b16 %v31
  %v102 = vunpack.c.l.b16 %v32
  %v103 = vunpack.c.l.b16 %v33
  %v104 = vunpack.c.l.b16 %v34
  %v105 = vunpack.c.l.b16 %v35
  %v106 = vunpack.c.l.b16 %v36
  %v107 = vunpack.c.l.b16 %v37
  %v108 = vunpack.c.l.b16 %v38
  %v109 = vunpack.c.l.b16 %v39
  %v110 = vunpack.c.l.b16 %v40
  %v111 = vunpack.c.l.b16 %v41
  %v112 = vunpack.c.l.b16 %v42
  %v113 = vunpack.c.l.b16 %v43
  %v114 = vunpack.c.l.b16 %v44
  %v115 = vunpack.c.l.b16 %v45
  %v116 = vunpack.c.l.b16 %v46
  %v117 = vunpack.c.l.b16 %v47
  %v118 = vunpack.c.l.b16 %v48
  %v119 = vunpack.c.l.b16 %v49
  %v120 = vunpack.c.l.b16 %v50
  %v121 = vunpack.c.l.b16 %v51
  %v122 = vunpack.c.l.b16 %v52
  %v123 = vunpack.c.l.b16 %v53
  %v124 = vunpack.c.l.b16 %v54
  %v125 = vunpack.c.l.b16 %v55
  %v126 = vpack.c.b16 %v95, %v94
  %v127 = vpack.c.b16 %v97, %v96
  %v128 = vpack.c.b16 %v99, %v98
  %v129 = vpack.c.b16 %v101, %v100
  %v130 = vpack.c.b16 %v103, %v102
  %v131 = vpack.c.b16 %v105, %v104
  %v132 = vpack.c.b16 %v107, %v106
  %v133 = vpack.c.b16 %v109, %v108
  %v134 = vpack.c.b16 %v111, %v110
  %v135 = vpack.c.b16 %v113, %v112
  %v136 = vpack.c.b16 %v115, %v114
  %v137 = vpack.c.b16 %v117, %v116
  %v138 = vpack.c.b16 %v119, %v118
  %v139 = vpack.c.b16 %v121, %v120
  %v140 = vpack.c.b16 %v123, %v122
  %v141 = vpack.c.b16 %v125, %v124
  %v144 = vunpack.c.l.b16 %v56
  %v145 = vunpack.c.l.b16 %v57
  %v146 = vpack.c.b16 %v145, %v144
  %vm148 = vcmask 130048
  %v150 = vsel %vm148, %v126, 0
  %v153 = vsel %vm148, %v127, 0
  %v156 = vsel %vm148, %v128, 0
  %v159 = vsel %vm148, %v129, 0
  %v162 = vsel %vm148, %v130, 0
  %v165 = vsel %vm148, %v131, 0
  %v168 = vsel %vm148, %v132, 0
  %v171 = vsel %vm148, %v133, 0
  %v174 = vsel %vm148, %v134, 0
  %v177 = vsel %vm148, %v135, 0
  %v180 = vsel %vm148, %v136, 0
  %v183 = vsel %vm148, %v137, 0
  %v186 = vsel %vm148, %v138, 0
  %v189 = vsel %vm148, %v139, 0
  %v192 = vsel %vm148, %v140, 0
  %v195 = vsel %vm148, %v141, 0
  %197 = vmatpush.bf16.msra.mxu0 0
  %198 = vmatpush.bf16.msra.mxu0 0
  %199 = vmatpush.bf16.msra.mxu0 0
  %200 = vmatpush.bf16.msra.mxu0 0
  %201 = vmatpush.bf16.msra.mxu0 0
  %202 = vmatpush.bf16.msra.mxu0 0
  %203 = vmatpush.bf16.msra.mxu0 0
  %204 = vmatpush.bf16.msra.mxu0 %v146
  %205 = vmatmul.bf16.gmra.mxu0 %v150
  %v206 = vpop.f32.mrf.mxu0
  %v207 = vadd.f32 %v60, %v206
  %v208 = vpop.f32.mrf.mxu0
  %v209 = vadd.f32 %v60, %v208
  %210 = vmatmul.bf16.gmra.mxu0 %v153
  %v211 = vpop.f32.mrf.mxu0
  %v212 = vadd.f32 %v60, %v211
  %v213 = vpop.f32.mrf.mxu0
  %v214 = vadd.f32 %v60, %v213
  %215 = vmatmul.bf16.gmra.mxu0 %v156
  %v216 = vpop.f32.mrf.mxu0
  %v217 = vadd.f32 %v60, %v216
  %v218 = vpop.f32.mrf.mxu0
  %v219 = vadd.f32 %v60, %v218
  %220 = vmatmul.bf16.gmra.mxu0 %v159
  %v221 = vpop.f32.mrf.mxu0
  %v222 = vadd.f32 %v60, %v221
  %v223 = vpop.f32.mrf.mxu0
  %v224 = vadd.f32 %v60, %v223
  %225 = vmatmul.bf16.gmra.mxu0 %v162
  %v226 = vpop.f32.mrf.mxu0
  %v227 = vadd.f32 %v60, %v226
  %v228 = vpop.f32.mrf.mxu0
  %v229 = vadd.f32 %v60, %v228
  %230 = vmatmul.bf16.gmra.mxu0 %v165
  %v231 = vpop.f32.mrf.mxu0
  %v232 = vadd.f32 %v60, %v231
  %v233 = vpop.f32.mrf.mxu0
  %v234 = vadd.f32 %v60, %v233
  %235 = vmatmul.bf16.gmra.mxu0 %v168
  %v236 = vpop.f32.mrf.mxu0
  %v237 = vadd.f32 %v60, %v236
  %v238 = vpop.f32.mrf.mxu0
  %v239 = vadd.f32 %v60, %v238
  %240 = vmatmul.bf16.gmra.mxu0 %v171
  %v241 = vpop.f32.mrf.mxu0
  %v242 = vadd.f32 %v60, %v241
  %v243 = vpop.f32.mrf.mxu0
  %v244 = vadd.f32 %v60, %v243
  %245 = vmatmul.bf16.gmra.mxu0 %v174
  %v246 = vpop.f32.mrf.mxu0
  %v247 = vadd.f32 %v60, %v246
  %v248 = vpop.f32.mrf.mxu0
  %v249 = vadd.f32 %v60, %v248
  %250 = vmatmul.bf16.gmra.mxu0 %v177
  %v251 = vpop.f32.mrf.mxu0
  %v252 = vadd.f32 %v60, %v251
  %v253 = vpop.f32.mrf.mxu0
  %v254 = vadd.f32 %v60, %v253
  %255 = vmatmul.bf16.gmra.mxu0 %v180
  %v256 = vpop.f32.mrf.mxu0
  %v257 = vadd.f32 %v60, %v256
  %v258 = vpop.f32.mrf.mxu0
  %v259 = vadd.f32 %v60, %v258
  %260 = vmatmul.bf16.gmra.mxu0 %v183
  %v261 = vpop.f32.mrf.mxu0
  %v262 = vadd.f32 %v60, %v261
  %v263 = vpop.f32.mrf.mxu0
  %v264 = vadd.f32 %v60, %v263
  %265 = vmatmul.bf16.gmra.mxu0 %v186
  %v266 = vpop.f32.mrf.mxu0
  %v267 = vadd.f32 %v60, %v266
  %v268 = vpop.f32.mrf.mxu0
  %v269 = vadd.f32 %v60, %v268
  %270 = vmatmul.bf16.gmra.mxu0 %v189
  %v271 = vpop.f32.mrf.mxu0
  %v272 = vadd.f32 %v60, %v271
  %v273 = vpop.f32.mrf.mxu0
  %v274 = vadd.f32 %v60, %v273
  %275 = vmatmul.bf16.gmra.mxu0 %v192
  %v276 = vpop.f32.mrf.mxu0
  %v277 = vadd.f32 %v60, %v276
  %v278 = vpop.f32.mrf.mxu0
  %v279 = vadd.f32 %v60, %v278
  %280 = vmatmul.bf16.gmra.mxu0 %v195
  %v281 = vpop.f32.mrf.mxu0
  %v282 = vadd.f32 %v60, %v281
  %v283 = vpop.f32.mrf.mxu0
  %v284 = vadd.f32 %v60, %v283
  %285 = vdwg.mxu0
  %286 = vst [vmem:[#allocation2] sm:$0xff] %v207
  %287 = vst [vmem:[#allocation2 + $0x8] sm:$0xff] %v209
  %288 = vst [vmem:[#allocation2 + $0x10] sm:$0xff] %v212
  %289 = vst [vmem:[#allocation2 + $0x18] sm:$0xff] %v214
  %290 = vst [vmem:[#allocation2 + $0x20] sm:$0xff] %v217
  %291 = vst [vmem:[#allocation2 + $0x28] sm:$0xff] %v219
  %292 = vst [vmem:[#allocation2 + $0x30] sm:$0xff] %v222
  %293 = vst [vmem:[#allocation2 + $0x38] sm:$0xff] %v224
  %294 = vst [vmem:[#allocation2 + $0x40] sm:$0xff] %v227
  %295 = vst [vmem:[#allocation2 + $0x48] sm:$0xff] %v229
  %296 = vst [vmem:[#allocation2 + $0x50] sm:$0xff] %v232
  %297 = vst [vmem:[#allocation2 + $0x58] sm:$0xff] %v234
  %298 = vst [vmem:[#allocation2 + $0x60] sm:$0xff] %v237
  %299 = vst [vmem:[#allocation2 + $0x68] sm:$0xff] %v239
  %300 = vst [vmem:[#allocation2 + $0x70] sm:$0xff] %v242
  %301 = vst [vmem:[#allocation2 + $0x78] sm:$0xff] %v244
  %302 = vst [vmem:[#allocation2 + $0x80] sm:$0xff] %v247
  %303 = vst [vmem:[#allocation2 + $0x88] sm:$0xff] %v249
  %304 = vst [vmem:[#allocation2 + $0x90] sm:$0xff] %v252
  %305 = vst [vmem:[#allocation2 + $0x98] sm:$0xff] %v254
  %306 = vst [vmem:[#allocation2 + $0xa0] sm:$0xff] %v257
  %307 = vst [vmem:[#allocation2 + $0xa8] sm:$0xff] %v259
  %308 = vst [vmem:[#allocation2 + $0xb0] sm:$0xff] %v262
  %309 = vst [vmem:[#allocation2 + $0xb8] sm:$0xff] %v264
  %310 = vst [vmem:[#allocation2 + $0xc0] sm:$0xff] %v267
  %311 = vst [vmem:[#allocation2 + $0xc8] sm:$0xff] %v269
  %312 = vst [vmem:[#allocation2 + $0xd0] sm:$0xff] %v272
  %313 = vst [vmem:[#allocation2 + $0xd8] sm:$0xff] %v274
  %314 = vst [vmem:[#allocation2 + $0xe0] sm:$0xff] %v277
  %315 = vst [vmem:[#allocation2 + $0xe8] sm:$0xff] %v279
  %316 = vst [vmem:[#allocation2 + $0xf0] sm:$0xff] %v282
  %317 = vst [vmem:[#allocation2 + $0xf8] sm:$0xff] %v284
  %v318 = vlaneseq
  %v319 = vand.u32 %v318, 127
  %vm320 = vcmp.lt.s32.totalorder %v319, 32
  %v321 = vld [vmem:[%s2] sm:$0xf]
  %v322 = vld [vmem:[%s2 + $0x4] sm:$0xf]
  %v323 = vld [vmem:[%s2 + $0x8] sm:$0xf]
  %v324 = vld [vmem:[%s2 + $0xc] sm:$0xf]
  %v325 = vld [vmem:[#allocation2] sm:$0xff]
  %v326 = vld [vmem:[#allocation2 + $0x8] sm:$0xff]
  %v327 = vld [vmem:[#allocation2 + $0x10] sm:$0xff]
  %v328 = vld [vmem:[#allocation2 + $0x18] sm:$0xff]
  %v333 = vunpack.c.l.b16 %v321
  %v334 = vunpack.c.l.b16 %v322
  %v335 = vunpack.c.l.b16 %v323
  %v336 = vunpack.c.l.b16 %v324
  %v337 = vpack.c.b16 %v334, %v333
  %v338 = vpack.c.b16 %v336, %v335
  %vm341 = vcmask 261120
  %v343 = vsel %vm341, 0, 0
  %345 = vmatpush.bf16.msra.mxu0 0
  %346 = vmatpush.bf16.msra.mxu0 0
  %347 = vmatpush.bf16.msra.mxu0 0
  %348 = vmatpush.bf16.msra.mxu0 0
  %349 = vmatpush.bf16.msra.mxu0 0
  %350 = vmatpush.bf16.msra.mxu0 0
  %351 = vmatpush.bf16.msra.mxu0 %v338
  %352 = vmatpush.bf16.msra.mxu0 %v337
  %353 = vmatmul.bf16.gmra.mxu0 %v343
  %v354 = vpop.f32.mrf.mxu0
  %v355 = vadd.f32 0.0, %v354
  %v356 = vpop.f32.mrf.mxu0
  %v357 = vadd.f32 0.0, %v356
  %358 = vmatmul.bf16.gmra.mxu0 %v343
  %v359 = vpop.f32.mrf.mxu0
  %v360 = vadd.f32 0.0, %v359
  %v361 = vpop.f32.mrf.mxu0
  %v362 = vadd.f32 0.0, %v361
  %363 = vdwg.mxu0
  %v364 = vadd.f32 %v325, %v355
  %v365 = vadd.f32 %v326, %v357
  %v366 = vadd.f32 %v327, %v360
  %v367 = vadd.f32 %v328, %v362
  %v368 = vmul.f32 %v364, 0.5
  %v369 = vmul.f32 %v365, 0.5
  %v370 = vmul.f32 %v366, 0.5
  %v371 = vmul.f32 %v367, 0.5
  %v372 = vsel %vm320, %v364, %v368
  %v373 = vsel %vm320, %v365, %v369
  %v374 = vsel %vm320, %v366, %v370
  %v375 = vsel %vm320, %v367, %v371
  %v376 = vtanh.pop %v372
  %v377 = vtanh.pop %v373
  %v378 = vtanh.pop %v374
  %v379 = vtanh.pop %v375
  %v380 = vmul.f32 %v376, 0.5
  %v381 = vmul.f32 %v377, 0.5
  %v382 = vmul.f32 %v378, 0.5
  %v383 = vmul.f32 %v379, 0.5
  %v384 = vadd.f32 %v380, 0.5
  %v385 = vadd.f32 %v381, 0.5
  %v386 = vadd.f32 %v382, 0.5
  %v387 = vadd.f32 %v383, 0.5
  %v388 = vsel %vm320, %v376, %v384
  %v389 = vsel %vm320, %v377, %v385
  %v390 = vsel %vm320, %v378, %v386
  %v391 = vsel %vm320, %v379, %v387
  %396 = vrot.lane.b32.xlu0 %v388, 96
  %v397 = vpop.permute.xlu0 %396
  %398 = vrot.lane.b32.xlu0 %v389, 96
  %v399 = vpop.permute.xlu0 %398
  %400 = vrot.lane.b32.xlu0 %v390, 96
  %v401 = vpop.permute.xlu0 %400
  %402 = vrot.lane.b32.xlu0 %v391, 96
  %v403 = vpop.permute.xlu0 %402
  %v408 = vmul.f32 %v388, %v397
  %v409 = vmul.f32 %v389, %v399
  %v410 = vmul.f32 %v390, %v401
  %v411 = vmul.f32 %v391, %v403
  %v412 = vmul.f32 %v388, 0.0
  %v413 = vmul.f32 %v389, 0.0
  %v414 = vmul.f32 %v390, 0.0
  %v415 = vmul.f32 %v391, 0.0
  %420 = vrot.lane.b32.xlu0 %v412, 64
  %v421 = vpop.permute.xlu0 %420
  %422 = vrot.lane.b32.xlu0 %v413, 64
  %v423 = vpop.permute.xlu0 %422
  %424 = vrot.lane.b32.xlu0 %v414, 64
  %v425 = vpop.permute.xlu0 %424
  %426 = vrot.lane.b32.xlu0 %v415, 64
  %v427 = vpop.permute.xlu0 %426
  %v432 = vadd.f32 %v408, %v421
  %v433 = vadd.f32 %v409, %v423
  %v434 = vadd.f32 %v410, %v425
  %v435 = vadd.f32 %v411, %v427
  %v436 = vtanh.pop %v432
  %v437 = vtanh.pop %v433
  %v438 = vtanh.pop %v434
  %v439 = vtanh.pop %v435
  %440 = vrot.lane.b32.xlu0 %v388, 32
  %v441 = vpop.permute.xlu0 %440
  %442 = vrot.lane.b32.xlu0 %v389, 32
  %v443 = vpop.permute.xlu0 %442
  %444 = vrot.lane.b32.xlu0 %v390, 32
  %v445 = vpop.permute.xlu0 %444
  %446 = vrot.lane.b32.xlu0 %v391, 32
  %v447 = vpop.permute.xlu0 %446
  %v452 = vmul.f32 %v436, %v441
  %v453 = vmul.f32 %v437, %v443
  %v454 = vmul.f32 %v438, %v445
  %v455 = vmul.f32 %v439, %v447
  %s456 = scalar_lea.vmem [#allocation2], 32
  %v457 = vld [vmem:[%s456] sm:$0xff]
  %v458 = vld [vmem:[%s456 + $0x8] sm:$0xff]
  %v459 = vld [vmem:[%s456 + $0x10] sm:$0xff]
  %v460 = vld [vmem:[%s456 + $0x18] sm:$0xff]
  %v461 = vpack.c.bf16 %v453, %v452
  %v462 = vpack.c.bf16 %v455, %v454
  %v464 = vsel %vm341, %v461, 0
  %v467 = vsel %vm341, %v462, 0
  %469 = vmatpush.bf16.msra.mxu0 0
  %470 = vmatpush.bf16.msra.mxu0 0
  %471 = vmatpush.bf16.msra.mxu0 0
  %472 = vmatpush.bf16.msra.mxu0 0
  %473 = vmatpush.bf16.msra.mxu0 0
  %474 = vmatpush.bf16.msra.mxu0 0
  %475 = vmatpush.bf16.msra.mxu0 %v338
  %476 = vmatpush.bf16.msra.mxu0 %v337
  %477 = vmatmul.bf16.gmra.mxu0 %v464
  %v478 = vpop.f32.mrf.mxu0
  %v479 = vadd.f32 0.0, %v478
  %v480 = vpop.f32.mrf.mxu0
  %v481 = vadd.f32 0.0, %v480
  %482 = vmatmul.bf16.gmra.mxu0 %v467
  %v483 = vpop.f32.mrf.mxu0
  %v484 = vadd.f32 0.0, %v483
  %v485 = vpop.f32.mrf.mxu0
  %v486 = vadd.f32 0.0, %v485
  %487 = vdwg.mxu0
  %v488 = vadd.f32 %v457, %v479
  %v489 = vadd.f32 %v458, %v481
  %v490 = vadd.f32 %v459, %v484
  %v491 = vadd.f32 %v460, %v486
  %v492 = vmul.f32 %v488, 0.5
  %v493 = vmul.f32 %v489, 0.5
  %v494 = vmul.f32 %v490, 0.5
  %v495 = vmul.f32 %v491, 0.5
  %v496 = vsel %vm320, %v488, %v492
  %v497 = vsel %vm320, %v489, %v493
  %v498 = vsel %vm320, %v490, %v494
  %v499 = vsel %vm320, %v491, %v495
  %v500 = vtanh.pop %v496
  %v501 = vtanh.pop %v497
  %v502 = vtanh.pop %v498
  %v503 = vtanh.pop %v499
  %v504 = vmul.f32 %v500, 0.5
  %v505 = vmul.f32 %v501, 0.5
  %v506 = vmul.f32 %v502, 0.5
  %v507 = vmul.f32 %v503, 0.5
  %v508 = vadd.f32 %v504, 0.5
  %v509 = vadd.f32 %v505, 0.5
  %v510 = vadd.f32 %v506, 0.5
  %v511 = vadd.f32 %v507, 0.5
  %v512 = vsel %vm320, %v500, %v508
  %v513 = vsel %vm320, %v501, %v509
  %v514 = vsel %vm320, %v502, %v510
  %v515 = vsel %vm320, %v503, %v511
  %520 = vrot.lane.b32.xlu0 %v512, 96
  %v521 = vpop.permute.xlu0 %520
  %522 = vrot.lane.b32.xlu0 %v513, 96
  %v523 = vpop.permute.xlu0 %522
  %524 = vrot.lane.b32.xlu0 %v514, 96
  %v525 = vpop.permute.xlu0 %524
  %526 = vrot.lane.b32.xlu0 %v515, 96
  %v527 = vpop.permute.xlu0 %526
  %v532 = vmul.f32 %v512, %v521
  %v533 = vmul.f32 %v513, %v523
  %v534 = vmul.f32 %v514, %v525
  %v535 = vmul.f32 %v515, %v527
  %536 = vrot.lane.b32.xlu0 %v512, 64
  %v537 = vpop.permute.xlu0 %536
  %538 = vrot.lane.b32.xlu0 %v513, 64
  %v539 = vpop.permute.xlu0 %538
  %540 = vrot.lane.b32.xlu0 %v514, 64
  %v541 = vpop.permute.xlu0 %540
  %542 = vrot.lane.b32.xlu0 %v515, 64
  %v543 = vpop.permute.xlu0 %542
  %v548 = vmul.f32 %v432, %v537
  %v549 = vmul.f32 %v433, %v539
  %v550 = vmul.f32 %v434, %v541
  %v551 = vmul.f32 %v435, %v543
  %v552 = vadd.f32 %v532, %v548
  %v553 = vadd.f32 %v533, %v549
  %v554 = vadd.f32 %v534, %v550
  %v555 = vadd.f32 %v535, %v551
  %v556 = vtanh.pop %v552
  %v557 = vtanh.pop %v553
  %v558 = vtanh.pop %v554
  %v559 = vtanh.pop %v555
  %560 = vrot.lane.b32.xlu0 %v512, 32
  %v561 = vpop.permute.xlu0 %560
  %562 = vrot.lane.b32.xlu0 %v513, 32
  %v563 = vpop.permute.xlu0 %562
  %564 = vrot.lane.b32.xlu0 %v514, 32
  %v565 = vpop.permute.xlu0 %564
  %566 = vrot.lane.b32.xlu0 %v515, 32
  %v567 = vpop.permute.xlu0 %566
  %v572 = vmul.f32 %v556, %v561
  %v573 = vmul.f32 %v557, %v563
  %v574 = vmul.f32 %v558, %v565
  %v575 = vmul.f32 %v559, %v567
  %s576 = scalar_lea.vmem [#allocation2], 64
  %v577 = vld [vmem:[%s576] sm:$0xff]
  %v578 = vld [vmem:[%s576 + $0x8] sm:$0xff]
  %v579 = vld [vmem:[%s576 + $0x10] sm:$0xff]
  %v580 = vld [vmem:[%s576 + $0x18] sm:$0xff]
  %v581 = vpack.c.bf16 %v573, %v572
  %v582 = vpack.c.bf16 %v575, %v574
  %v584 = vsel %vm341, %v581, 0
  %v587 = vsel %vm341, %v582, 0
  %589 = vmatpush.bf16.msra.mxu0 0
  %590 = vmatpush.bf16.msra.mxu0 0
  %591 = vmatpush.bf16.msra.mxu0 0
  %592 = vmatpush.bf16.msra.mxu0 0
  %593 = vmatpush.bf16.msra.mxu0 0
  %594 = vmatpush.bf16.msra.mxu0 0
  %595 = vmatpush.bf16.msra.mxu0 %v338
  %596 = vmatpush.bf16.msra.mxu0 %v337
  %597 = vmatmul.bf16.gmra.mxu0 %v584
  %v598 = vpop.f32.mrf.mxu0
  %v599 = vadd.f32 0.0, %v598
  %v600 = vpop.f32.mrf.mxu0
  %v601 = vadd.f32 0.0, %v600
  %602 = vmatmul.bf16.gmra.mxu0 %v587
  %v603 = vpop.f32.mrf.mxu0
  %v604 = vadd.f32 0.0, %v603
  %v605 = vpop.f32.mrf.mxu0
  %v606 = vadd.f32 0.0, %v605
  %607 = vdwg.mxu0
  %v608 = vadd.f32 %v577, %v599
  %v609 = vadd.f32 %v578, %v601
  %v610 = vadd.f32 %v579, %v604
  %v611 = vadd.f32 %v580, %v606
  %v612 = vmul.f32 %v608, 0.5
  %v613 = vmul.f32 %v609, 0.5
  %v614 = vmul.f32 %v610, 0.5
  %v615 = vmul.f32 %v611, 0.5
  %v616 = vsel %vm320, %v608, %v612
  %v617 = vsel %vm320, %v609, %v613
  %v618 = vsel %vm320, %v610, %v614
  %v619 = vsel %vm320, %v611, %v615
  %v620 = vtanh.pop %v616
  %v621 = vtanh.pop %v617
  %v622 = vtanh.pop %v618
  %v623 = vtanh.pop %v619
  %v624 = vmul.f32 %v620, 0.5
  %v625 = vmul.f32 %v621, 0.5
  %v626 = vmul.f32 %v622, 0.5
  %v627 = vmul.f32 %v623, 0.5
  %v628 = vadd.f32 %v624, 0.5
  %v629 = vadd.f32 %v625, 0.5
  %v630 = vadd.f32 %v626, 0.5
  %v631 = vadd.f32 %v627, 0.5
  %v632 = vsel %vm320, %v620, %v628
  %v633 = vsel %vm320, %v621, %v629
  %v634 = vsel %vm320, %v622, %v630
  %v635 = vsel %vm320, %v623, %v631
  %640 = vrot.lane.b32.xlu0 %v632, 96
  %v641 = vpop.permute.xlu0 %640
  %642 = vrot.lane.b32.xlu0 %v633, 96
  %v643 = vpop.permute.xlu0 %642
  %644 = vrot.lane.b32.xlu0 %v634, 96
  %v645 = vpop.permute.xlu0 %644
  %646 = vrot.lane.b32.xlu0 %v635, 96
  %v647 = vpop.permute.xlu0 %646
  %v652 = vmul.f32 %v632, %v641
  %v653 = vmul.f32 %v633, %v643
  %v654 = vmul.f32 %v634, %v645
  %v655 = vmul.f32 %v635, %v647
  %656 = vrot.lane.b32.xlu0 %v632, 64
  %v657 = vpop.permute.xlu0 %656
  %658 = vrot.lane.b32.xlu0 %v633, 64
  %v659 = vpop.permute.xlu0 %658
  %660 = vrot.lane.b32.xlu0 %v634, 64
  %v661 = vpop.permute.xlu0 %660
  %662 = vrot.lane.b32.xlu0 %v635, 64
  %v663 = vpop.permute.xlu0 %662
  %v668 = vmul.f32 %v552, %v657
  %v669 = vmul.f32 %v553, %v659
  %v670 = vmul.f32 %v554, %v661
  %v671 = vmul.f32 %v555, %v663
  %v672 = vadd.f32 %v652, %v668
  %v673 = vadd.f32 %v653, %v669
  %v674 = vadd.f32 %v654, %v670
  %v675 = vadd.f32 %v655, %v671
  %v676 = vtanh.pop %v672
  %v677 = vtanh.pop %v673
  %v678 = vtanh.pop %v674
  %v679 = vtanh.pop %v675
  %680 = vrot.lane.b32.xlu0 %v632, 32
  %v681 = vpop.permute.xlu0 %680
  %682 = vrot.lane.b32.xlu0 %v633, 32
  %v683 = vpop.permute.xlu0 %682
  %684 = vrot.lane.b32.xlu0 %v634, 32
  %v685 = vpop.permute.xlu0 %684
  %686 = vrot.lane.b32.xlu0 %v635, 32
  %v687 = vpop.permute.xlu0 %686
  %v692 = vmul.f32 %v676, %v681
  %v693 = vmul.f32 %v677, %v683
  %v694 = vmul.f32 %v678, %v685
  %v695 = vmul.f32 %v679, %v687
  %s696 = scalar_lea.vmem [#allocation2], 96
  %v697 = vld [vmem:[%s696] sm:$0xff]
  %v698 = vld [vmem:[%s696 + $0x8] sm:$0xff]
  %v699 = vld [vmem:[%s696 + $0x10] sm:$0xff]
  %v700 = vld [vmem:[%s696 + $0x18] sm:$0xff]
  %v701 = vpack.c.bf16 %v693, %v692
  %v702 = vpack.c.bf16 %v695, %v694
  %v704 = vsel %vm341, %v701, 0
  %v707 = vsel %vm341, %v702, 0
  %709 = vmatpush.bf16.msra.mxu0 0
  %710 = vmatpush.bf16.msra.mxu0 0
  %711 = vmatpush.bf16.msra.mxu0 0
  %712 = vmatpush.bf16.msra.mxu0 0
  %713 = vmatpush.bf16.msra.mxu0 0
  %714 = vmatpush.bf16.msra.mxu0 0
  %715 = vmatpush.bf16.msra.mxu0 %v338
  %716 = vmatpush.bf16.msra.mxu0 %v337
  %717 = vmatmul.bf16.gmra.mxu0 %v704
  %v718 = vpop.f32.mrf.mxu0
  %v719 = vadd.f32 0.0, %v718
  %v720 = vpop.f32.mrf.mxu0
  %v721 = vadd.f32 0.0, %v720
  %722 = vmatmul.bf16.gmra.mxu0 %v707
  %v723 = vpop.f32.mrf.mxu0
  %v724 = vadd.f32 0.0, %v723
  %v725 = vpop.f32.mrf.mxu0
  %v726 = vadd.f32 0.0, %v725
  %727 = vdwg.mxu0
  %v728 = vadd.f32 %v697, %v719
  %v729 = vadd.f32 %v698, %v721
  %v730 = vadd.f32 %v699, %v724
  %v731 = vadd.f32 %v700, %v726
  %v732 = vmul.f32 %v728, 0.5
  %v733 = vmul.f32 %v729, 0.5
  %v734 = vmul.f32 %v730, 0.5
  %v735 = vmul.f32 %v731, 0.5
  %v736 = vsel %vm320, %v728, %v732
  %v737 = vsel %vm320, %v729, %v733
  %v738 = vsel %vm320, %v730, %v734
  %v739 = vsel %vm320, %v731, %v735
  %v740 = vtanh.pop %v736
  %v741 = vtanh.pop %v737
  %v742 = vtanh.pop %v738
  %v743 = vtanh.pop %v739
  %v744 = vmul.f32 %v740, 0.5
  %v745 = vmul.f32 %v741, 0.5
  %v746 = vmul.f32 %v742, 0.5
  %v747 = vmul.f32 %v743, 0.5
  %v748 = vadd.f32 %v744, 0.5
  %v749 = vadd.f32 %v745, 0.5
  %v750 = vadd.f32 %v746, 0.5
  %v751 = vadd.f32 %v747, 0.5
  %v752 = vsel %vm320, %v740, %v748
  %v753 = vsel %vm320, %v741, %v749
  %v754 = vsel %vm320, %v742, %v750
  %v755 = vsel %vm320, %v743, %v751
  %760 = vrot.lane.b32.xlu0 %v752, 96
  %v761 = vpop.permute.xlu0 %760
  %762 = vrot.lane.b32.xlu0 %v753, 96
  %v763 = vpop.permute.xlu0 %762
  %764 = vrot.lane.b32.xlu0 %v754, 96
  %v765 = vpop.permute.xlu0 %764
  %766 = vrot.lane.b32.xlu0 %v755, 96
  %v767 = vpop.permute.xlu0 %766
  %v772 = vmul.f32 %v752, %v761
  %v773 = vmul.f32 %v753, %v763
  %v774 = vmul.f32 %v754, %v765
  %v775 = vmul.f32 %v755, %v767
  %776 = vrot.lane.b32.xlu0 %v752, 64
  %v777 = vpop.permute.xlu0 %776
  %778 = vrot.lane.b32.xlu0 %v753, 64
  %v779 = vpop.permute.xlu0 %778
  %780 = vrot.lane.b32.xlu0 %v754, 64
  %v781 = vpop.permute.xlu0 %780
  %782 = vrot.lane.b32.xlu0 %v755, 64
  %v783 = vpop.permute.xlu0 %782
  %v788 = vmul.f32 %v672, %v777
  %v789 = vmul.f32 %v673, %v779
  %v790 = vmul.f32 %v674, %v781
  %v791 = vmul.f32 %v675, %v783
  %v792 = vadd.f32 %v772, %v788
  %v793 = vadd.f32 %v773, %v789
  %v794 = vadd.f32 %v774, %v790
  %v795 = vadd.f32 %v775, %v791
  %v796 = vtanh.pop %v792
  %v797 = vtanh.pop %v793
  %v798 = vtanh.pop %v794
  %v799 = vtanh.pop %v795
  %800 = vrot.lane.b32.xlu0 %v752, 32
  %v801 = vpop.permute.xlu0 %800
  %802 = vrot.lane.b32.xlu0 %v753, 32
  %v803 = vpop.permute.xlu0 %802
  %804 = vrot.lane.b32.xlu0 %v754, 32
  %v805 = vpop.permute.xlu0 %804
  %806 = vrot.lane.b32.xlu0 %v755, 32
  %v807 = vpop.permute.xlu0 %806
  %v812 = vmul.f32 %v796, %v801
  %v813 = vmul.f32 %v797, %v803
  %v814 = vmul.f32 %v798, %v805
  %v815 = vmul.f32 %v799, %v807
  %s816 = scalar_lea.vmem [#allocation2], 128
  %v817 = vld [vmem:[%s816] sm:$0xff]
  %v818 = vld [vmem:[%s816 + $0x8] sm:$0xff]
  %v819 = vld [vmem:[%s816 + $0x10] sm:$0xff]
  %v820 = vld [vmem:[%s816 + $0x18] sm:$0xff]
  %v821 = vpack.c.bf16 %v813, %v812
  %v822 = vpack.c.bf16 %v815, %v814
  %v824 = vsel %vm341, %v821, 0
  %v827 = vsel %vm341, %v822, 0
  %829 = vmatpush.bf16.msra.mxu0 0
  %830 = vmatpush.bf16.msra.mxu0 0
  %831 = vmatpush.bf16.msra.mxu0 0
  %832 = vmatpush.bf16.msra.mxu0 0
  %833 = vmatpush.bf16.msra.mxu0 0
  %834 = vmatpush.bf16.msra.mxu0 0
  %835 = vmatpush.bf16.msra.mxu0 %v338
  %836 = vmatpush.bf16.msra.mxu0 %v337
  %837 = vmatmul.bf16.gmra.mxu0 %v824
  %v838 = vpop.f32.mrf.mxu0
  %v839 = vadd.f32 0.0, %v838
  %v840 = vpop.f32.mrf.mxu0
  %v841 = vadd.f32 0.0, %v840
  %842 = vmatmul.bf16.gmra.mxu0 %v827
  %v843 = vpop.f32.mrf.mxu0
  %v844 = vadd.f32 0.0, %v843
  %v845 = vpop.f32.mrf.mxu0
  %v846 = vadd.f32 0.0, %v845
  %847 = vdwg.mxu0
  %v848 = vadd.f32 %v817, %v839
  %v849 = vadd.f32 %v818, %v841
  %v850 = vadd.f32 %v819, %v844
  %v851 = vadd.f32 %v820, %v846
  %v852 = vmul.f32 %v848, 0.5
  %v853 = vmul.f32 %v849, 0.5
  %v854 = vmul.f32 %v850, 0.5
  %v855 = vmul.f32 %v851, 0.5
  %v856 = vsel %vm320, %v848, %v852
  %v857 = vsel %vm320, %v849, %v853
  %v858 = vsel %vm320, %v850, %v854
  %v859 = vsel %vm320, %v851, %v855
  %v860 = vtanh.pop %v856
  %v861 = vtanh.pop %v857
  %v862 = vtanh.pop %v858
  %v863 = vtanh.pop %v859
  %v864 = vmul.f32 %v860, 0.5
  %v865 = vmul.f32 %v861, 0.5
  %v866 = vmul.f32 %v862, 0.5
  %v867 = vmul.f32 %v863, 0.5
  %v868 = vadd.f32 %v864, 0.5
  %v869 = vadd.f32 %v865, 0.5
  %v870 = vadd.f32 %v866, 0.5
  %v871 = vadd.f32 %v867, 0.5
  %v872 = vsel %vm320, %v860, %v868
  %v873 = vsel %vm320, %v861, %v869
  %v874 = vsel %vm320, %v862, %v870
  %v875 = vsel %vm320, %v863, %v871
  %880 = vrot.lane.b32.xlu0 %v872, 96
  %v881 = vpop.permute.xlu0 %880
  %882 = vrot.lane.b32.xlu0 %v873, 96
  %v883 = vpop.permute.xlu0 %882
  %884 = vrot.lane.b32.xlu0 %v874, 96
  %v885 = vpop.permute.xlu0 %884
  %886 = vrot.lane.b32.xlu0 %v875, 96
  %v887 = vpop.permute.xlu0 %886
  %v892 = vmul.f32 %v872, %v881
  %v893 = vmul.f32 %v873, %v883
  %v894 = vmul.f32 %v874, %v885
  %v895 = vmul.f32 %v875, %v887
  %896 = vrot.lane.b32.xlu0 %v872, 64
  %v897 = vpop.permute.xlu0 %896
  %898 = vrot.lane.b32.xlu0 %v873, 64
  %v899 = vpop.permute.xlu0 %898
  %900 = vrot.lane.b32.xlu0 %v874, 64
  %v901 = vpop.permute.xlu0 %900
  %902 = vrot.lane.b32.xlu0 %v875, 64
  %v903 = vpop.permute.xlu0 %902
  %v908 = vmul.f32 %v792, %v897
  %v909 = vmul.f32 %v793, %v899
  %v910 = vmul.f32 %v794, %v901
  %v911 = vmul.f32 %v795, %v903
  %v912 = vadd.f32 %v892, %v908
  %v913 = vadd.f32 %v893, %v909
  %v914 = vadd.f32 %v894, %v910
  %v915 = vadd.f32 %v895, %v911
  %v916 = vtanh.pop %v912
  %v917 = vtanh.pop %v913
  %v918 = vtanh.pop %v914
  %v919 = vtanh.pop %v915
  %920 = vrot.lane.b32.xlu0 %v872, 32
  %v921 = vpop.permute.xlu0 %920
  %922 = vrot.lane.b32.xlu0 %v873, 32
  %v923 = vpop.permute.xlu0 %922
  %924 = vrot.lane.b32.xlu0 %v874, 32
  %v925 = vpop.permute.xlu0 %924
  %926 = vrot.lane.b32.xlu0 %v875, 32
  %v927 = vpop.permute.xlu0 %926
  %v932 = vmul.f32 %v916, %v921
  %v933 = vmul.f32 %v917, %v923
  %v934 = vmul.f32 %v918, %v925
  %v935 = vmul.f32 %v919, %v927
  %s936 = scalar_lea.vmem [#allocation2], 160
  %v937 = vld [vmem:[%s936] sm:$0xff]
  %v938 = vld [vmem:[%s936 + $0x8] sm:$0xff]
  %v939 = vld [vmem:[%s936 + $0x10] sm:$0xff]
  %v940 = vld [vmem:[%s936 + $0x18] sm:$0xff]
  %v941 = vpack.c.bf16 %v933, %v932
  %v942 = vpack.c.bf16 %v935, %v934
  %v944 = vsel %vm341, %v941, 0
  %v947 = vsel %vm341, %v942, 0
  %949 = vmatpush.bf16.msra.mxu0 0
  %950 = vmatpush.bf16.msra.mxu0 0
  %951 = vmatpush.bf16.msra.mxu0 0
  %952 = vmatpush.bf16.msra.mxu0 0
  %953 = vmatpush.bf16.msra.mxu0 0
  %954 = vmatpush.bf16.msra.mxu0 0
  %955 = vmatpush.bf16.msra.mxu0 %v338
  %956 = vmatpush.bf16.msra.mxu0 %v337
  %957 = vmatmul.bf16.gmra.mxu0 %v944
  %v958 = vpop.f32.mrf.mxu0
  %v959 = vadd.f32 0.0, %v958
  %v960 = vpop.f32.mrf.mxu0
  %v961 = vadd.f32 0.0, %v960
  %962 = vmatmul.bf16.gmra.mxu0 %v947
  %v963 = vpop.f32.mrf.mxu0
  %v964 = vadd.f32 0.0, %v963
  %v965 = vpop.f32.mrf.mxu0
  %v966 = vadd.f32 0.0, %v965
  %967 = vdwg.mxu0
  %v968 = vadd.f32 %v937, %v959
  %v969 = vadd.f32 %v938, %v961
  %v970 = vadd.f32 %v939, %v964
  %v971 = vadd.f32 %v940, %v966
  %v972 = vmul.f32 %v968, 0.5
  %v973 = vmul.f32 %v969, 0.5
  %v974 = vmul.f32 %v970, 0.5
  %v975 = vmul.f32 %v971, 0.5
  %v976 = vsel %vm320, %v968, %v972
  %v977 = vsel %vm320, %v969, %v973
  %v978 = vsel %vm320, %v970, %v974
  %v979 = vsel %vm320, %v971, %v975
  %v980 = vtanh.pop %v976
  %v981 = vtanh.pop %v977
  %v982 = vtanh.pop %v978
  %v983 = vtanh.pop %v979
  %v984 = vmul.f32 %v980, 0.5
  %v985 = vmul.f32 %v981, 0.5
  %v986 = vmul.f32 %v982, 0.5
  %v987 = vmul.f32 %v983, 0.5
  %v988 = vadd.f32 %v984, 0.5
  %v989 = vadd.f32 %v985, 0.5
  %v990 = vadd.f32 %v986, 0.5
  %v991 = vadd.f32 %v987, 0.5
  %v992 = vsel %vm320, %v980, %v988
  %v993 = vsel %vm320, %v981, %v989
  %v994 = vsel %vm320, %v982, %v990
  %v995 = vsel %vm320, %v983, %v991
  %1000 = vrot.lane.b32.xlu0 %v992, 96
  %v1001 = vpop.permute.xlu0 %1000
  %1002 = vrot.lane.b32.xlu0 %v993, 96
  %v1003 = vpop.permute.xlu0 %1002
  %1004 = vrot.lane.b32.xlu0 %v994, 96
  %v1005 = vpop.permute.xlu0 %1004
  %1006 = vrot.lane.b32.xlu0 %v995, 96
  %v1007 = vpop.permute.xlu0 %1006
  %v1012 = vmul.f32 %v992, %v1001
  %v1013 = vmul.f32 %v993, %v1003
  %v1014 = vmul.f32 %v994, %v1005
  %v1015 = vmul.f32 %v995, %v1007
  %1016 = vrot.lane.b32.xlu0 %v992, 64
  %v1017 = vpop.permute.xlu0 %1016
  %1018 = vrot.lane.b32.xlu0 %v993, 64
  %v1019 = vpop.permute.xlu0 %1018
  %1020 = vrot.lane.b32.xlu0 %v994, 64
  %v1021 = vpop.permute.xlu0 %1020
  %1022 = vrot.lane.b32.xlu0 %v995, 64
  %v1023 = vpop.permute.xlu0 %1022
  %v1028 = vmul.f32 %v912, %v1017
  %v1029 = vmul.f32 %v913, %v1019
  %v1030 = vmul.f32 %v914, %v1021
  %v1031 = vmul.f32 %v915, %v1023
  %v1032 = vadd.f32 %v1012, %v1028
  %v1033 = vadd.f32 %v1013, %v1029
  %v1034 = vadd.f32 %v1014, %v1030
  %v1035 = vadd.f32 %v1015, %v1031
  %v1036 = vtanh.pop %v1032
  %v1037 = vtanh.pop %v1033
  %v1038 = vtanh.pop %v1034
  %v1039 = vtanh.pop %v1035
  %1040 = vrot.lane.b32.xlu0 %v992, 32
  %v1041 = vpop.permute.xlu0 %1040
  %1042 = vrot.lane.b32.xlu0 %v993, 32
  %v1043 = vpop.permute.xlu0 %1042
  %1044 = vrot.lane.b32.xlu0 %v994, 32
  %v1045 = vpop.permute.xlu0 %1044
  %1046 = vrot.lane.b32.xlu0 %v995, 32
  %v1047 = vpop.permute.xlu0 %1046
  %v1052 = vmul.f32 %v1036, %v1041
  %v1053 = vmul.f32 %v1037, %v1043
  %v1054 = vmul.f32 %v1038, %v1045
  %v1055 = vmul.f32 %v1039, %v1047
  %s1056 = scalar_lea.vmem [#allocation2], 192
  %v1057 = vld [vmem:[%s1056] sm:$0xff]
  %v1058 = vld [vmem:[%s1056 + $0x8] sm:$0xff]
  %v1059 = vld [vmem:[%s1056 + $0x10] sm:$0xff]
  %v1060 = vld [vmem:[%s1056 + $0x18] sm:$0xff]
  %v1061 = vpack.c.bf16 %v1053, %v1052
  %v1062 = vpack.c.bf16 %v1055, %v1054
  %v1064 = vsel %vm341, %v1061, 0
  %v1067 = vsel %vm341, %v1062, 0
  %1069 = vmatpush.bf16.msra.mxu0 0
  %1070 = vmatpush.bf16.msra.mxu0 0
  %1071 = vmatpush.bf16.msra.mxu0 0
  %1072 = vmatpush.bf16.msra.mxu0 0
  %1073 = vmatpush.bf16.msra.mxu0 0
  %1074 = vmatpush.bf16.msra.mxu0 0
  %1075 = vmatpush.bf16.msra.mxu0 %v338
  %1076 = vmatpush.bf16.msra.mxu0 %v337
  %1077 = vmatmul.bf16.gmra.mxu0 %v1064
  %v1078 = vpop.f32.mrf.mxu0
  %v1079 = vadd.f32 0.0, %v1078
  %v1080 = vpop.f32.mrf.mxu0
  %v1081 = vadd.f32 0.0, %v1080
  %1082 = vmatmul.bf16.gmra.mxu0 %v1067
  %v1083 = vpop.f32.mrf.mxu0
  %v1084 = vadd.f32 0.0, %v1083
  %v1085 = vpop.f32.mrf.mxu0
  %v1086 = vadd.f32 0.0, %v1085
  %1087 = vdwg.mxu0
  %v1088 = vadd.f32 %v1057, %v1079
  %v1089 = vadd.f32 %v1058, %v1081
  %v1090 = vadd.f32 %v1059, %v1084
  %v1091 = vadd.f32 %v1060, %v1086
  %v1092 = vmul.f32 %v1088, 0.5
  %v1093 = vmul.f32 %v1089, 0.5
  %v1094 = vmul.f32 %v1090, 0.5
  %v1095 = vmul.f32 %v1091, 0.5
  %v1096 = vsel %vm320, %v1088, %v1092
  %v1097 = vsel %vm320, %v1089, %v1093
  %v1098 = vsel %vm320, %v1090, %v1094
  %v1099 = vsel %vm320, %v1091, %v1095
  %v1100 = vtanh.pop %v1096
  %v1101 = vtanh.pop %v1097
  %v1102 = vtanh.pop %v1098
  %v1103 = vtanh.pop %v1099
  %v1104 = vmul.f32 %v1100, 0.5
  %v1105 = vmul.f32 %v1101, 0.5
  %v1106 = vmul.f32 %v1102, 0.5
  %v1107 = vmul.f32 %v1103, 0.5
  %v1108 = vadd.f32 %v1104, 0.5
  %v1109 = vadd.f32 %v1105, 0.5
  %v1110 = vadd.f32 %v1106, 0.5
  %v1111 = vadd.f32 %v1107, 0.5
  %v1112 = vsel %vm320, %v1100, %v1108
  %v1113 = vsel %vm320, %v1101, %v1109
  %v1114 = vsel %vm320, %v1102, %v1110
  %v1115 = vsel %vm320, %v1103, %v1111
  %1120 = vrot.lane.b32.xlu0 %v1112, 96
  %v1121 = vpop.permute.xlu0 %1120
  %1122 = vrot.lane.b32.xlu0 %v1113, 96
  %v1123 = vpop.permute.xlu0 %1122
  %1124 = vrot.lane.b32.xlu0 %v1114, 96
  %v1125 = vpop.permute.xlu0 %1124
  %1126 = vrot.lane.b32.xlu0 %v1115, 96
  %v1127 = vpop.permute.xlu0 %1126
  %v1132 = vmul.f32 %v1112, %v1121
  %v1133 = vmul.f32 %v1113, %v1123
  %v1134 = vmul.f32 %v1114, %v1125
  %v1135 = vmul.f32 %v1115, %v1127
  %1136 = vrot.lane.b32.xlu0 %v1112, 64
  %v1137 = vpop.permute.xlu0 %1136
  %1138 = vrot.lane.b32.xlu0 %v1113, 64
  %v1139 = vpop.permute.xlu0 %1138
  %1140 = vrot.lane.b32.xlu0 %v1114, 64
  %v1141 = vpop.permute.xlu0 %1140
  %1142 = vrot.lane.b32.xlu0 %v1115, 64
  %v1143 = vpop.permute.xlu0 %1142
  %v1148 = vmul.f32 %v1032, %v1137
  %v1149 = vmul.f32 %v1033, %v1139
  %v1150 = vmul.f32 %v1034, %v1141
  %v1151 = vmul.f32 %v1035, %v1143
  %v1152 = vadd.f32 %v1132, %v1148
  %v1153 = vadd.f32 %v1133, %v1149
  %v1154 = vadd.f32 %v1134, %v1150
  %v1155 = vadd.f32 %v1135, %v1151
  %v1156 = vtanh.pop %v1152
  %v1157 = vtanh.pop %v1153
  %v1158 = vtanh.pop %v1154
  %v1159 = vtanh.pop %v1155
  %1160 = vrot.lane.b32.xlu0 %v1112, 32
  %v1161 = vpop.permute.xlu0 %1160
  %1162 = vrot.lane.b32.xlu0 %v1113, 32
  %v1163 = vpop.permute.xlu0 %1162
  %1164 = vrot.lane.b32.xlu0 %v1114, 32
  %v1165 = vpop.permute.xlu0 %1164
  %1166 = vrot.lane.b32.xlu0 %v1115, 32
  %v1167 = vpop.permute.xlu0 %1166
  %v1172 = vmul.f32 %v1156, %v1161
  %v1173 = vmul.f32 %v1157, %v1163
  %v1174 = vmul.f32 %v1158, %v1165
  %v1175 = vmul.f32 %v1159, %v1167
  %s1176 = scalar_lea.vmem [#allocation2], 224
  %v1177 = vld [vmem:[%s1176] sm:$0xff]
  %v1178 = vld [vmem:[%s1176 + $0x8] sm:$0xff]
  %v1179 = vld [vmem:[%s1176 + $0x10] sm:$0xff]
  %v1180 = vld [vmem:[%s1176 + $0x18] sm:$0xff]
  %v1181 = vpack.c.bf16 %v1173, %v1172
  %v1182 = vpack.c.bf16 %v1175, %v1174
  %v1184 = vsel %vm341, %v1181, 0
  %v1187 = vsel %vm341, %v1182, 0
  %1189 = vmatpush.bf16.msra.mxu0 0
  %1190 = vmatpush.bf16.msra.mxu0 0
  %1191 = vmatpush.bf16.msra.mxu0 0
  %1192 = vmatpush.bf16.msra.mxu0 0
  %1193 = vmatpush.bf16.msra.mxu0 0
  %1194 = vmatpush.bf16.msra.mxu0 0
  %1195 = vmatpush.bf16.msra.mxu0 %v338
  %1196 = vmatpush.bf16.msra.mxu0 %v337
  %1197 = vmatmul.bf16.gmra.mxu0 %v1184
  %v1198 = vpop.f32.mrf.mxu0
  %v1199 = vadd.f32 0.0, %v1198
  %v1200 = vpop.f32.mrf.mxu0
  %v1201 = vadd.f32 0.0, %v1200
  %1202 = vmatmul.bf16.gmra.mxu0 %v1187
  %v1203 = vpop.f32.mrf.mxu0
  %v1204 = vadd.f32 0.0, %v1203
  %v1205 = vpop.f32.mrf.mxu0
  %v1206 = vadd.f32 0.0, %v1205
  %1207 = vdwg.mxu0
  %v1208 = vadd.f32 %v1177, %v1199
  %v1209 = vadd.f32 %v1178, %v1201
  %v1210 = vadd.f32 %v1179, %v1204
  %v1211 = vadd.f32 %v1180, %v1206
  %v1212 = vmul.f32 %v1208, 0.5
  %v1213 = vmul.f32 %v1209, 0.5
  %v1214 = vmul.f32 %v1210, 0.5
  %v1215 = vmul.f32 %v1211, 0.5
  %v1216 = vsel %vm320, %v1208, %v1212
  %v1217 = vsel %vm320, %v1209, %v1213
  %v1218 = vsel %vm320, %v1210, %v1214
  %v1219 = vsel %vm320, %v1211, %v1215
  %v1220 = vtanh.pop %v1216
  %v1221 = vtanh.pop %v1217
  %v1222 = vtanh.pop %v1218
  %v1223 = vtanh.pop %v1219
  %v1224 = vmul.f32 %v1220, 0.5
  %v1225 = vmul.f32 %v1221, 0.5
  %v1226 = vmul.f32 %v1222, 0.5
  %v1227 = vmul.f32 %v1223, 0.5
  %v1228 = vadd.f32 %v1224, 0.5
  %v1229 = vadd.f32 %v1225, 0.5
  %v1230 = vadd.f32 %v1226, 0.5
  %v1231 = vadd.f32 %v1227, 0.5
  %v1232 = vsel %vm320, %v1220, %v1228
  %v1233 = vsel %vm320, %v1221, %v1229
  %v1234 = vsel %vm320, %v1222, %v1230
  %v1235 = vsel %vm320, %v1223, %v1231
  %1240 = vrot.lane.b32.xlu0 %v1232, 96
  %v1241 = vpop.permute.xlu0 %1240
  %1242 = vrot.lane.b32.xlu0 %v1233, 96
  %v1243 = vpop.permute.xlu0 %1242
  %1244 = vrot.lane.b32.xlu0 %v1234, 96
  %v1245 = vpop.permute.xlu0 %1244
  %1246 = vrot.lane.b32.xlu0 %v1235, 96
  %v1247 = vpop.permute.xlu0 %1246
  %v1252 = vmul.f32 %v1232, %v1241
  %v1253 = vmul.f32 %v1233, %v1243
  %v1254 = vmul.f32 %v1234, %v1245
  %v1255 = vmul.f32 %v1235, %v1247
  %1256 = vrot.lane.b32.xlu0 %v1232, 64
  %v1257 = vpop.permute.xlu0 %1256
  %1258 = vrot.lane.b32.xlu0 %v1233, 64
  %v1259 = vpop.permute.xlu0 %1258
  %1260 = vrot.lane.b32.xlu0 %v1234, 64
  %v1261 = vpop.permute.xlu0 %1260
  %1262 = vrot.lane.b32.xlu0 %v1235, 64
  %v1263 = vpop.permute.xlu0 %1262
  %v1268 = vmul.f32 %v1152, %v1257
  %v1269 = vmul.f32 %v1153, %v1259
  %v1270 = vmul.f32 %v1154, %v1261
  %v1271 = vmul.f32 %v1155, %v1263
  %v1272 = vadd.f32 %v1252, %v1268
  %v1273 = vadd.f32 %v1253, %v1269
  %v1274 = vadd.f32 %v1254, %v1270
  %v1275 = vadd.f32 %v1255, %v1271
  %v1276 = vtanh.pop %v1272
  %v1277 = vtanh.pop %v1273
  %v1278 = vtanh.pop %v1274
  %v1279 = vtanh.pop %v1275
  %1280 = vrot.lane.b32.xlu0 %v1232, 32
  %v1281 = vpop.permute.xlu0 %1280
  %1282 = vrot.lane.b32.xlu0 %v1233, 32
  %v1283 = vpop.permute.xlu0 %1282
  %1284 = vrot.lane.b32.xlu0 %v1234, 32
  %v1285 = vpop.permute.xlu0 %1284
  %1286 = vrot.lane.b32.xlu0 %v1235, 32
  %v1287 = vpop.permute.xlu0 %1286
  %v1292 = vmul.f32 %v1276, %v1281
  %v1293 = vmul.f32 %v1277, %v1283
  %v1294 = vmul.f32 %v1278, %v1285
  %v1295 = vmul.f32 %v1279, %v1287
  %v1296 = vpack.c.bf16 %v1293, %v1292
  %v1297 = vpack.c.bf16 %v1295, %v1294
  %v1298 = vld [vmem:[%s4] sm:$0xf]
  %v1299 = vld [vmem:[%s4 + $0x4] sm:$0xf]
  %v1300 = vld [vmem:[%s4 + $0x8] sm:$0xf]
  %v1301 = vld [vmem:[%s4 + $0xc] sm:$0xf]
  %v1302 = vld [vmem:[%s5] sm:$0x1]
  %v1304 = vperm.slane %v1302, 0
  %v1310 = vunpack.c.l.b16 %v1298
  %v1311 = vunpack.c.l.b16 %v1299
  %v1312 = vunpack.c.l.b16 %v1300
  %v1313 = vunpack.c.l.b16 %v1301
  %v1314 = vpack.c.b16 %v1311, %v1310
  %v1315 = vpack.c.b16 %v1313, %v1312
  %v1319 = vsel %vm341, %v1296, 0
  %v1322 = vsel %vm341, %v1297, 0
  %1324 = vmatpush.bf16.msra.mxu0 0
  %1325 = vmatpush.bf16.msra.mxu0 0
  %1326 = vmatpush.bf16.msra.mxu0 0
  %1327 = vmatpush.bf16.msra.mxu0 0
  %1328 = vmatpush.bf16.msra.mxu0 0
  %1329 = vmatpush.bf16.msra.mxu0 0
  %1330 = vmatpush.bf16.msra.mxu0 %v1315
  %1331 = vmatpush.bf16.msra.mxu0 %v1314
  %1332 = vmatmul.bf16.gmra.mxu0 %v1319
  %v1333 = vpop.f32.mrf.mxu0
  %v1334 = vadd.f32 %v1304, %v1333
  %v1335 = vpop.f32.mrf.mxu0
  %v1336 = vadd.f32 %v1304, %v1335
  %1337 = vmatmul.bf16.gmra.mxu0 %v1322
  %v1338 = vpop.f32.mrf.mxu0
  %v1339 = vadd.f32 %v1304, %v1338
  %v1340 = vpop.f32.mrf.mxu0
  %v1341 = vadd.f32 %v1304, %v1340
  %1342 = vdwg.mxu0
  %1343 = vst [vmem:[%s6] sm:$0xff] %v1334
  %1344 = vst [vmem:[%s6 + $0x8] sm:$0xff] %v1336
  %1345 = vst [vmem:[%s6 + $0x10] sm:$0xff] %v1339
  %1346 = vst [vmem:[%s6 + $0x18] sm:$0xff] %v1341
  // Predicated region
  $region26: #{lstm_forward.1} parent=0 // pred_check
    _
  $region27: #{lstm_forward.1} parent=0 // pred_check_branch
    %1348 = sbr.rel (0) target = $region29
  $region28: #{lstm_forward.1} parent=0 // pred_region
    _
  $region29: #{lstm_forward.1} parent=0 // pred_fallthru
    _
  // Predicated region
  $region30: #{lstm_forward.1} parent=0 // pred_check
    _
  $region31: #{lstm_forward.1} parent=0 // pred_check_branch
    %1350 = sbr.rel (0) target = $region33
  $region32: #{lstm_forward.1} parent=0 // pred_region
    _
  $region33: #{lstm_forward.1} parent=0 // pred_fallthru
    _

</llo_original>
